<compile_context>
chip_gen: v7x
topology: tpu7x:2x2x1
jax: 0.10.0
libtpu: 0.0.40
codegen_flags: <defaults>
</compile_context>

<pallas_src>
import math
import functools

import jax
import jax.numpy as jnp
import numpy as np
from jax.experimental import pallas as pl
from jax.experimental.pallas import tpu as pltpu

# ---------------- model hyper-parameters (fixed by the module) ------------------
H       = 4    # attention heads
D_MODEL = 32   # embedding size
D_K     = 8    # query/key features per head
D_V     = 8    # value features per head
D_FF    = 64   # feed-forward hidden size
EPS     = 1e-5 # LayerNorm eps (PyTorch default)

# column offsets inside the packed weight slab  [ wq | wk | wv | wo | w1 ]
_WQKV_OFF = 0                     # 3*D_MODEL columns (wq|wk|wv)
_WO_OFF   = 3 * D_MODEL
_W1_OFF   = 4 * D_MODEL
_WA_COLS  = 4 * D_MODEL + D_FF    # 192

# row indices inside the packed bias/gain slab (each row zero-padded to D_FF lanes)
(_R_BQ, _R_BK, _R_BV, _R_BO,
 _R_G1, _R_BE1, _R_BF1, _R_BF2, _R_G2, _R_BE2) = range(10)
_N_VEC_ROWS = 10


def encoder_unit_kernel(x_ref, wa_ref, w2_ref, vec_ref, o_ref,
                        *, b_blk, seq_len, mm_dtype):
    """Processes one block of `b_blk` batch elements per grid step.

    x_ref   : (b_blk*seq_len, D_MODEL)  activation rows for this block
    wa_ref  : (D_MODEL, 192)            packed [wq|wk|wv|wo|w1]  (f32)
    w2_ref  : (D_FF, D_MODEL)                                     (f32)
    vec_ref : (10, D_FF)                packed biases / LN gains (lane-padded)
    o_ref   : (b_blk*seq_len, D_MODEL)
    """
    f32 = jnp.float32
    rows = b_blk * seq_len

    x = x_ref[...].astype(f32)                                 # (rows, 32)

    # ---- hoisted parameter reads; weights cast once to the MXU operand dtype ---
    w_qkv = wa_ref[:, _WQKV_OFF:_WQKV_OFF + 3 * D_MODEL].astype(mm_dtype)
    wo    = wa_ref[:, _WO_OFF:_WO_OFF + D_MODEL].astype(mm_dtype)
    w1    = wa_ref[:, _W1_OFF:_W1_OFF + D_FF].astype(mm_dtype)
    w2    = w2_ref[...].astype(mm_dtype)

    bq  = vec_ref[_R_BQ:_R_BQ + 1,   0:D_MODEL]
    bk  = vec_ref[_R_BK:_R_BK + 1,   0:D_MODEL]
    bv  = vec_ref[_R_BV:_R_BV + 1,   0:D_MODEL]
    bo  = vec_ref[_R_BO:_R_BO + 1,   0:D_MODEL]
    g1  = vec_ref[_R_G1:_R_G1 + 1,   0:D_MODEL]
    be1 = vec_ref[_R_BE1:_R_BE1 + 1, 0:D_MODEL]
    bf1 = vec_ref[_R_BF1:_R_BF1 + 1, 0:D_FF]
    bf2 = vec_ref[_R_BF2:_R_BF2 + 1, 0:D_MODEL]
    g2  = vec_ref[_R_G2:_R_G2 + 1,   0:D_MODEL]
    be2 = vec_ref[_R_BE2:_R_BE2 + 1, 0:D_MODEL]

    # ---- fused QKV projection: one (rows, 32) @ (32, 96) MXU pass --------------
    qkv = jnp.dot(x.astype(mm_dtype), w_qkv, preferred_element_type=f32)
    q = qkv[:, 0:D_MODEL] + bq
    k = qkv[:, D_MODEL:2 * D_MODEL] + bk
    v = qkv[:, 2 * D_MODEL:3 * D_MODEL] + bv

    # ---- multi-head self-attention, batched over the whole batch block ---------
    # Cast q/k/v to the MXU dtype once (outside the head loop).
    q3 = q.astype(mm_dtype).reshape(b_blk, seq_len, D_MODEL)
    k3 = k.astype(mm_dtype).reshape(b_blk, seq_len, D_MODEL)
    v3 = v.astype(mm_dtype).reshape(b_blk, seq_len, D_MODEL)
    scale = 1.0 / math.sqrt(D_K)

    # TODO(synk): for large seq_len, tile over key blocks with an online softmax
    # instead of materializing the full (b_blk, S, S) f32 score tensor per head.
    ctx_heads = []
    for h in range(H):                                         # H = 4, unrolled
        qh = q3[:, :, h * D_K:(h + 1) * D_K]                   # (b_blk, S, D_K)
        kh = k3[:, :, h * D_K:(h + 1) * D_K]
        vh = v3[:, :, h * D_V:(h + 1) * D_V]
        s = jnp.einsum('bqd,bkd->bqk', qh, kh,
                       preferred_element_type=f32) * scale     # (b_blk, S, S)
        s = s - jnp.max(s, axis=-1, keepdims=True)
        p = jnp.exp(s)
        p = p * pl.reciprocal(jnp.sum(p, axis=-1, keepdims=True), approx=True)
        ctx = jnp.einsum('bqk,bkd->bqd', p.astype(mm_dtype), vh,
                         preferred_element_type=f32)           # (b_blk, S, D_V)
        ctx_heads.append(ctx.reshape(rows, D_V))

    # Single output projection: concat_h(ctx_h) @ Wo (one K=32 MXU matmul,
    # exactly the reference concat+matmul).
    ctx_all = jnp.concatenate(ctx_heads, axis=-1)              # (rows, 32) f32
    attn = jnp.dot(ctx_all.astype(mm_dtype), wo, preferred_element_type=f32) + bo

    # ---- residual + LayerNorm 1 -------------------------------------------------
    a1 = x + attn
    mu1 = jnp.mean(a1, axis=-1, keepdims=True)
    d1 = a1 - mu1
    var1 = jnp.mean(d1 * d1, axis=-1, keepdims=True)
    a1 = d1 * jax.lax.rsqrt(var1 + EPS) * g1 + be1

    # ---- feed-forward network: Linear -> ReLU -> Linear -------------------------
    hid = jnp.dot(a1.astype(mm_dtype), w1, preferred_element_type=f32) + bf1
    hid = jnp.maximum(hid, 0.0)
    ff = jnp.dot(hid.astype(mm_dtype), w2, preferred_element_type=f32) + bf2

    # ---- residual + LayerNorm 2 -------------------------------------------------
    a2 = a1 + ff
    mu2 = jnp.mean(a2, axis=-1, keepdims=True)
    d2 = a2 - mu2
    var2 = jnp.mean(d2 * d2, axis=-1, keepdims=True)
    out = d2 * jax.lax.rsqrt(var2 + EPS) * g2 + be2

    o_ref[...] = out.astype(o_ref.dtype)


def _choose_b_blk(batch, seq_len, desired_rows=4096, min_split_rows=512,
                  vmem_budget=16 * 1024 * 1024):
    """Pick batch-elements-per-grid-step.

    - Tiny workloads run as a single block (splitting a handful of rows across
      grid steps / TensorCores is pure per-step overhead).
    - Otherwise target ~desired_rows rows per step, keep >= 2 steps so v7x's
      two TensorCores both get work, and cap the per-step VMEM footprint
      (~2.2 KiB/row of f32 intermediates plus the per-head (b_blk, S, S) f32
      score tensor) so blocks also fit v7x's 64 MiB/TC and v5e comfortably.
    - rows-per-block must be a multiple of 8 (sublane tile) when the grid has
      more than one step.
    """
    seq_len = max(seq_len, 1)
    if batch * seq_len < 2 * min_split_rows or batch < 2:
        return batch                               # single block == full array

    def footprint(bb):
        rows = bb * seq_len
        return rows * 2240 + bb * seq_len * seq_len * 4

    b_blk = max(1, min(desired_rows // seq_len, batch // 2))
    while b_blk > 1 and footprint(b_blk) > vmem_budget:
        b_blk //= 2

    mult = 8 // math.gcd(seq_len, 8)               # make b_blk*seq_len % 8 == 0
    b_blk = max(mult, (b_blk // mult) * mult)
    return min(b_blk, batch)


@functools.partial(jax.jit, static_argnames=("mm_dtype",))
def encoder_unit(seq, params, mm_dtype=jnp.bfloat16):
    """seq: (B, S, D_MODEL).  Returns (B, S, D_MODEL) in seq.dtype.

    mm_dtype controls the MXU operand dtype (accumulation is always f32).
    Default bfloat16 is native on v5e/v6e/v7x; use jnp.float32 for tight parity
    with the f32 reference.
    """
    B, S, D = seq.shape
    assert D == D_MODEL

    (wq, bq, wk, bk, wv, bv, wo, bo,
     g1, be1, w1, bf1, w2, bf2, g2, be2) = params

    b_blk = _choose_b_blk(B, S)
    n_blocks = pl.cdiv(B, b_blk)
    b_pad = n_blocks * b_blk
    rows_blk = b_blk * S

    # Keep the caller's dtype on the HBM wire; cast to f32 inside the kernel.
    x = seq
    if b_pad != B:
        x = jnp.pad(x, ((0, b_pad - B), (0, 0), (0, 0)))
    x2d = x.reshape(b_pad * S, D_MODEL)

    # ---- pack the 16 small parameters into 3 slabs ------------------------------
    wa = jnp.concatenate(
        [wq, wk, wv, wo, w1], axis=1).astype(jnp.float32)     # (D_MODEL, 192)
    w2f = w2.astype(jnp.float32)                               # (D_FF, D_MODEL)

    def _row(v):
        v = v.reshape(1, -1).astype(jnp.float32)
        return jnp.pad(v, ((0, 0), (0, D_FF - v.shape[1])))

    vecs = jnp.concatenate(
        [_row(t) for t in (bq, bk, bv, bo, g1, be1, bf1, bf2, g2, be2)],
        axis=0)                                               # (10, D_FF)

    kernel = functools.partial(encoder_unit_kernel,
                               b_blk=b_blk, seq_len=S, mm_dtype=mm_dtype)

    # TODO(synk): lane-dense (rows/4, 128) I/O blocks and block-diagonal
    # 4-tokens-per-row weight packing would remove the masked 32-lane stores,
    # but both need an in-kernel minor-dim relayout around attention that could
    # not be validated to lower cleanly; keeping the (rows, 32) layout.
    out2d = pl.pallas_call(
        kernel,
        out_shape=jax.ShapeDtypeStruct((b_pad * S, D_MODEL), seq.dtype),
        grid_spec=pltpu.PrefetchScalarGridSpec(
            num_scalar_prefetch=0,
            grid=(n_blocks,),
            in_specs=[
                pl.BlockSpec((rows_blk, D_MODEL), lambda i: (i, 0)),
                pl.BlockSpec(wa.shape, lambda i: (0, 0)),
                pl.BlockSpec(w2f.shape, lambda i: (0, 0)),
                pl.BlockSpec(vecs.shape, lambda i: (0, 0)),
            ],
            out_specs=pl.BlockSpec((rows_blk, D_MODEL), lambda i: (i, 0)),
        ),
        compiler_params=pltpu.CompilerParams(
            dimension_semantics=("parallel",),
            vmem_limit_bytes=40 * 1024 * 1024),
    )(x2d, wa, w2f, vecs)

    return out2d.reshape(b_pad, S, D_MODEL)[:B]


def init_params(key):
    """Deterministic parameter init (shapes from EncoderUnit.__init__)."""
    ks = jax.random.split(key, 12)

    def lin(k, fan_in, fan_out):
        bound = 1.0 / math.sqrt(fan_in)
        kw, kb = jax.random.split(k)
        w = jax.random.uniform(kw, (fan_in, fan_out), jnp.float32, -bound, bound)
        b = jax.random.uniform(kb, (1, fan_out), jnp.float32, -bound, bound)
        return w, b

    wq, bq = lin(ks[0], D_MODEL, H * D_K)
    wk, bk = lin(ks[1], D_MODEL, H * D_K)
    wv, bv = lin(ks[2], D_MODEL, H * D_V)
    wo, bo = lin(ks[3], H * D_V, D_MODEL)
    w1, bf1 = lin(ks[4], D_MODEL, D_FF)
    w2, bf2 = lin(ks[5], D_FF, D_MODEL)
    g1  = jnp.ones((1, D_MODEL), jnp.float32)
    be1 = jnp.zeros((1, D_MODEL), jnp.float32)
    g2  = jnp.ones((1, D_MODEL), jnp.float32)
    be2 = jnp.zeros((1, D_MODEL), jnp.float32)
    return (wq, bq, wk, bk, wv, bv, wo, bo, g1, be1, w1, bf1, w2, bf2, g2, be2)


def encoder_unit_ref(seq, params):
    """Pure-JAX reference matching the PyTorch forward semantics."""
    (wq, bq, wk, bk, wv, bv, wo, bo,
     g1, be1, w1, bf1, w2, bf2, g2, be2) = params
    x = seq.astype(jnp.float32)
    B, S, _ = x.shape
    q = (x @ wq + bq).reshape(B, S, H, D_K).transpose(0, 2, 1, 3)
    k = (x @ wk + bk).reshape(B, S, H, D_K).transpose(0, 2, 1, 3)
    v = (x @ wv + bv).reshape(B, S, H, D_V).transpose(0, 2, 1, 3)
    s = jnp.einsum("bhqd,bhkd->bhqk", q, k) / math.sqrt(D_K)
    p = jax.nn.softmax(s, axis=-1)
    ctx = jnp.einsum("bhqk,bhkd->bhqd", p, v).transpose(0, 2, 1, 3).reshape(B, S, H * D_V)
    attn = ctx @ wo + bo

    def ln(t, g, b):
        mu = jnp.mean(t, -1, keepdims=True)
        var = jnp.mean((t - mu) ** 2, -1, keepdims=True)
        return (t - mu) * jax.lax.rsqrt(var + EPS) * g + b

    a1 = ln(x + attn, g1, be1)
    ff = jnp.maximum(a1 @ w1 + bf1, 0.0) @ w2 + bf2
    return ln(a1 + ff, g2, be2)


if __name__ == "__main__":
    key = jax.random.PRNGKey(0)
    k_in, k_par = jax.random.split(key)

    B, S = 2, 8
    seq = jax.random.normal(k_in, (B, S, D_MODEL), jnp.float32)
    params = init_params(k_par)

    ref = encoder_unit_ref(seq, params)

    # Default path: bf16 MXU operands, f32 accumulation (loose tolerance).
    out_bf16 = jax.block_until_ready(encoder_unit(seq, params))
    np.testing.assert_allclose(np.asarray(out_bf16), np.asarray(ref),
                               rtol=5e-2, atol=5e-2)

    # f32-operand path: tight parity (only deviation is the EUP approximate
    # reciprocal in the softmax denominator).
    out_f32 = jax.block_until_ready(
        encoder_unit(seq, params, mm_dtype=jnp.float32))
    np.testing.assert_allclose(np.asarray(out_f32), np.asarray(ref),
                               rtol=2e-3, atol=2e-3)

    print("KERNEL_OK")
</pallas_src>

<mosaic_0001>
module attributes {stable_mosaic.version = 11 : i64} {
  func.func @encoder_unit_kernel(%arg0: i32, %arg1: memref<16x32xf32, #tpu.memory_space<vmem>>, %arg2: memref<32x192xf32, #tpu.memory_space<vmem>>, %arg3: memref<64x32xf32, #tpu.memory_space<vmem>>, %arg4: memref<10x64xf32, #tpu.memory_space<vmem>>, %arg5: memref<16x32xf32, #tpu.memory_space<vmem>>) attributes {dimension_semantics = [#tpu.dimension_semantics<parallel>], iteration_bounds = array<i64: 1>, scalar_prefetch = 0 : i64, scratch_operands = 0 : i64, tpu.core_type = #tpu.core_type<tc>, window_params = [{transform_indices = @transform_0, window_bounds = array<i64: 16, 32>}, {pipeline_mode = #tpu.pipeline_mode<synchronous>, transform_indices = @transform_1, window_bounds = array<i64: 32, 192>}, {pipeline_mode = #tpu.pipeline_mode<synchronous>, transform_indices = @transform_2, window_bounds = array<i64: 64, 32>}, {pipeline_mode = #tpu.pipeline_mode<synchronous>, transform_indices = @transform_3, window_bounds = array<i64: 10, 64>}, {transform_indices = @transform_4, window_bounds = array<i64: 16, 32>}]} {
    %c0 = arith.constant 0 : index
    %c0_0 = arith.constant 0 : index
    %0 = vector.load %arg1[%c0, %c0_0] : memref<16x32xf32, #tpu.memory_space<vmem>>, vector<16x32xf32>
    %c0_1 = arith.constant 0 : index
    %c0_2 = arith.constant 0 : index
    %1 = vector.load %arg2[%c0_1, %c0_2] : memref<32x192xf32, #tpu.memory_space<vmem>>, vector<32x96xf32>
    %2 = arith.truncf %1 : vector<32x96xf32> to vector<32x96xbf16>
    %c0_3 = arith.constant 0 : index
    %c96 = arith.constant 96 : index
    %3 = vector.load %arg2[%c0_3, %c96] : memref<32x192xf32, #tpu.memory_space<vmem>>, vector<32x32xf32>
    %4 = arith.truncf %3 : vector<32x32xf32> to vector<32x32xbf16>
    %c0_4 = arith.constant 0 : index
    %c128 = arith.constant 128 : index
    %5 = vector.load %arg2[%c0_4, %c128] : memref<32x192xf32, #tpu.memory_space<vmem>>, vector<32x64xf32>
    %6 = arith.truncf %5 : vector<32x64xf32> to vector<32x64xbf16>
    %c0_5 = arith.constant 0 : index
    %c0_6 = arith.constant 0 : index
    %7 = vector.load %arg3[%c0_5, %c0_6] : memref<64x32xf32, #tpu.memory_space<vmem>>, vector<64x32xf32>
    %8 = arith.truncf %7 : vector<64x32xf32> to vector<64x32xbf16>
    %c0_7 = arith.constant 0 : index
    %c0_8 = arith.constant 0 : index
    %9 = vector.load %arg4[%c0_7, %c0_8] : memref<10x64xf32, #tpu.memory_space<vmem>>, vector<1x32xf32>
    %c1 = arith.constant 1 : index
    %c0_9 = arith.constant 0 : index
    %10 = vector.load %arg4[%c1, %c0_9] : memref<10x64xf32, #tpu.memory_space<vmem>>, vector<1x32xf32>
    %c2 = arith.constant 2 : index
    %c0_10 = arith.constant 0 : index
    %11 = vector.load %arg4[%c2, %c0_10] : memref<10x64xf32, #tpu.memory_space<vmem>>, vector<1x32xf32>
    %c3 = arith.constant 3 : index
    %c0_11 = arith.constant 0 : index
    %12 = vector.load %arg4[%c3, %c0_11] : memref<10x64xf32, #tpu.memory_space<vmem>>, vector<1x32xf32>
    %c4 = arith.constant 4 : index
    %c0_12 = arith.constant 0 : index
    %13 = vector.load %arg4[%c4, %c0_12] : memref<10x64xf32, #tpu.memory_space<vmem>>, vector<1x32xf32>
    %c5 = arith.constant 5 : index
    %c0_13 = arith.constant 0 : index
    %14 = vector.load %arg4[%c5, %c0_13] : memref<10x64xf32, #tpu.memory_space<vmem>>, vector<1x32xf32>
    %c6 = arith.constant 6 : index
    %c0_14 = arith.constant 0 : index
    %15 = vector.load %arg4[%c6, %c0_14] : memref<10x64xf32, #tpu.memory_space<vmem>>, vector<1x64xf32>
    %c7 = arith.constant 7 : index
    %c0_15 = arith.constant 0 : index
    %16 = vector.load %arg4[%c7, %c0_15] : memref<10x64xf32, #tpu.memory_space<vmem>>, vector<1x32xf32>
    %c8 = arith.constant 8 : index
    %c0_16 = arith.constant 0 : index
    %17 = vector.load %arg4[%c8, %c0_16] : memref<10x64xf32, #tpu.memory_space<vmem>>, vector<1x32xf32>
    %c9 = arith.constant 9 : index
    %c0_17 = arith.constant 0 : index
    %18 = vector.load %arg4[%c9, %c0_17] : memref<10x64xf32, #tpu.memory_space<vmem>>, vector<1x32xf32>
    %19 = arith.truncf %0 : vector<16x32xf32> to vector<16x32xbf16>
    %cst = arith.constant dense<0.000000e+00> : vector<16x96xf32>
    %20 = tpu.matmul %19, %2, %cst {dimension_numbers = #tpu.dot_dimension_numbers<[1], [0], [0], [1], [0, 0, 1, 1], [], []>} : vector<16x32xbf16>, vector<32x96xbf16>, vector<16x96xf32> -> vector<16x96xf32>
    %21 = vector.extract_strided_slice %20 {offsets = [0, 0], sizes = [16, 32], strides = [1, 1]} : vector<16x96xf32> to vector<16x32xf32>
    %22 = vector.broadcast %9 : vector<1x32xf32> to vector<16x32xf32>
    %23 = arith.addf %21, %22 : vector<16x32xf32>
    %24 = vector.extract_strided_slice %20 {offsets = [0, 32], sizes = [16, 32], strides = [1, 1]} : vector<16x96xf32> to vector<16x32xf32>
    %25 = vector.broadcast %10 : vector<1x32xf32> to vector<16x32xf32>
    %26 = arith.addf %24, %25 : vector<16x32xf32>
    %27 = vector.extract_strided_slice %20 {offsets = [0, 64], sizes = [16, 32], strides = [1, 1]} : vector<16x96xf32> to vector<16x32xf32>
    %28 = vector.broadcast %11 : vector<1x32xf32> to vector<16x32xf32>
    %29 = arith.addf %27, %28 : vector<16x32xf32>
    %30 = arith.truncf %23 : vector<16x32xf32> to vector<16x32xbf16>
    %31 = vector.shape_cast %30 : vector<16x32xbf16> to vector<2x8x32xbf16>
    %32 = arith.truncf %26 : vector<16x32xf32> to vector<16x32xbf16>
    %33 = vector.shape_cast %32 : vector<16x32xbf16> to vector<2x8x32xbf16>
    %34 = arith.truncf %29 : vector<16x32xf32> to vector<16x32xbf16>
    %35 = vector.shape_cast %34 : vector<16x32xbf16> to vector<2x8x32xbf16>
    %36 = vector.extract_strided_slice %31 {offsets = [0, 0, 0], sizes = [2, 8, 8], strides = [1, 1, 1]} : vector<2x8x32xbf16> to vector<2x8x8xbf16>
    %37 = vector.extract_strided_slice %33 {offsets = [0, 0, 0], sizes = [2, 8, 8], strides = [1, 1, 1]} : vector<2x8x32xbf16> to vector<2x8x8xbf16>
    %38 = vector.extract_strided_slice %35 {offsets = [0, 0, 0], sizes = [2, 8, 8], strides = [1, 1, 1]} : vector<2x8x32xbf16> to vector<2x8x8xbf16>
    "tpu.trace_start"() <{level = 10 : i32, message = "bqd,bkd->bqk"}> : () -> ()
    %cst_18 = arith.constant dense<0.000000e+00> : vector<2x8x8xf32>
    %39 = tpu.matmul %36, %37, %cst_18 {dimension_numbers = #tpu.dot_dimension_numbers<[2], [2], [1], [1], [0, 0, 0, 1, 1, 1], [0], [0]>} : vector<2x8x8xbf16>, vector<2x8x8xbf16>, vector<2x8x8xf32> -> vector<2x8x8xf32>
    "tpu.trace_stop"() : () -> ()
    %cst_19 = arith.constant 0.353553385 : f32
    %40 = vector.broadcast %cst_19 : f32 to vector<2x8x8xf32>
    %41 = arith.mulf %39, %40 : vector<2x8x8xf32>
    %cst_20 = arith.constant dense<0xFF800000> : vector<2x8xf32>
    %42 = vector.multi_reduction <maximumf>, %41, %cst_20 [2] : vector<2x8x8xf32> to vector<2x8xf32>
    %43 = vector.shape_cast %42 : vector<2x8xf32> to vector<2x8x1xf32>
    %44 = vector.broadcast %43 : vector<2x8x1xf32> to vector<2x8x8xf32>
    %45 = arith.subf %41, %44 : vector<2x8x8xf32>
    %46 = math.exp %45 : vector<2x8x8xf32>
    %cst_21 = arith.constant dense<0.000000e+00> : vector<2x8xf32>
    %47 = vector.multi_reduction <add>, %46, %cst_21 [2] : vector<2x8x8xf32> to vector<2x8xf32>
    %48 = vector.shape_cast %47 : vector<2x8xf32> to vector<2x8x1xf32>
    %49 = tpu.reciprocal %48 {approx = true} : vector<2x8x1xf32> -> vector<2x8x1xf32>
    %50 = vector.broadcast %49 : vector<2x8x1xf32> to vector<2x8x8xf32>
    %51 = arith.mulf %46, %50 : vector<2x8x8xf32>
    %52 = arith.truncf %51 : vector<2x8x8xf32> to vector<2x8x8xbf16>
    "tpu.trace_start"() <{level = 10 : i32, message = "bqk,bkd->bqd"}> : () -> ()
    %cst_22 = arith.constant dense<0.000000e+00> : vector<2x8x8xf32>
    %53 = tpu.matmul %52, %38, %cst_22 {dimension_numbers = #tpu.dot_dimension_numbers<[2], [1], [1], [2], [0, 0, 0, 1, 1, 2], [0], [0]>} : vector<2x8x8xbf16>, vector<2x8x8xbf16>, vector<2x8x8xf32> -> vector<2x8x8xf32>
    "tpu.trace_stop"() : () -> ()
    %54 = vector.shape_cast %53 : vector<2x8x8xf32> to vector<16x8xf32>
    %55 = vector.extract_strided_slice %31 {offsets = [0, 0, 8], sizes = [2, 8, 8], strides = [1, 1, 1]} : vector<2x8x32xbf16> to vector<2x8x8xbf16>
    %56 = vector.extract_strided_slice %33 {offsets = [0, 0, 8], sizes = [2, 8, 8], strides = [1, 1, 1]} : vector<2x8x32xbf16> to vector<2x8x8xbf16>
    %57 = vector.extract_strided_slice %35 {offsets = [0, 0, 8], sizes = [2, 8, 8], strides = [1, 1, 1]} : vector<2x8x32xbf16> to vector<2x8x8xbf16>
    "tpu.trace_start"() <{level = 10 : i32, message = "bqd,bkd->bqk"}> : () -> ()
    %cst_23 = arith.constant dense<0.000000e+00> : vector<2x8x8xf32>
    %58 = tpu.matmul %55, %56, %cst_23 {dimension_numbers = #tpu.dot_dimension_numbers<[2], [2], [1], [1], [0, 0, 0, 1, 1, 1], [0], [0]>} : vector<2x8x8xbf16>, vector<2x8x8xbf16>, vector<2x8x8xf32> -> vector<2x8x8xf32>
    "tpu.trace_stop"() : () -> ()
    %cst_24 = arith.constant 0.353553385 : f32
    %59 = vector.broadcast %cst_24 : f32 to vector<2x8x8xf32>
    %60 = arith.mulf %58, %59 : vector<2x8x8xf32>
    %cst_25 = arith.constant dense<0xFF800000> : vector<2x8xf32>
    %61 = vector.multi_reduction <maximumf>, %60, %cst_25 [2] : vector<2x8x8xf32> to vector<2x8xf32>
    %62 = vector.shape_cast %61 : vector<2x8xf32> to vector<2x8x1xf32>
    %63 = vector.broadcast %62 : vector<2x8x1xf32> to vector<2x8x8xf32>
    %64 = arith.subf %60, %63 : vector<2x8x8xf32>
    %65 = math.exp %64 : vector<2x8x8xf32>
    %cst_26 = arith.constant dense<0.000000e+00> : vector<2x8xf32>
    %66 = vector.multi_reduction <add>, %65, %cst_26 [2] : vector<2x8x8xf32> to vector<2x8xf32>
    %67 = vector.shape_cast %66 : vector<2x8xf32> to vector<2x8x1xf32>
    %68 = tpu.reciprocal %67 {approx = true} : vector<2x8x1xf32> -> vector<2x8x1xf32>
    %69 = vector.broadcast %68 : vector<2x8x1xf32> to vector<2x8x8xf32>
    %70 = arith.mulf %65, %69 : vector<2x8x8xf32>
    %71 = arith.truncf %70 : vector<2x8x8xf32> to vector<2x8x8xbf16>
    "tpu.trace_start"() <{level = 10 : i32, message = "bqk,bkd->bqd"}> : () -> ()
    %cst_27 = arith.constant dense<0.000000e+00> : vector<2x8x8xf32>
    %72 = tpu.matmul %71, %57, %cst_27 {dimension_numbers = #tpu.dot_dimension_numbers<[2], [1], [1], [2], [0, 0, 0, 1, 1, 2], [0], [0]>} : vector<2x8x8xbf16>, vector<2x8x8xbf16>, vector<2x8x8xf32> -> vector<2x8x8xf32>
    "tpu.trace_stop"() : () -> ()
    %73 = vector.shape_cast %72 : vector<2x8x8xf32> to vector<16x8xf32>
    %74 = vector.extract_strided_slice %31 {offsets = [0, 0, 16], sizes = [2, 8, 8], strides = [1, 1, 1]} : vector<2x8x32xbf16> to vector<2x8x8xbf16>
    %75 = vector.extract_strided_slice %33 {offsets = [0, 0, 16], sizes = [2, 8, 8], strides = [1, 1, 1]} : vector<2x8x32xbf16> to vector<2x8x8xbf16>
    %76 = vector.extract_strided_slice %35 {offsets = [0, 0, 16], sizes = [2, 8, 8], strides = [1, 1, 1]} : vector<2x8x32xbf16> to vector<2x8x8xbf16>
    "tpu.trace_start"() <{level = 10 : i32, message = "bqd,bkd->bqk"}> : () -> ()
    %cst_28 = arith.constant dense<0.000000e+00> : vector<2x8x8xf32>
    %77 = tpu.matmul %74, %75, %cst_28 {dimension_numbers = #tpu.dot_dimension_numbers<[2], [2], [1], [1], [0, 0, 0, 1, 1, 1], [0], [0]>} : vector<2x8x8xbf16>, vector<2x8x8xbf16>, vector<2x8x8xf32> -> vector<2x8x8xf32>
    "tpu.trace_stop"() : () -> ()
    %cst_29 = arith.constant 0.353553385 : f32
    %78 = vector.broadcast %cst_29 : f32 to vector<2x8x8xf32>
    %79 = arith.mulf %77, %78 : vector<2x8x8xf32>
    %cst_30 = arith.constant dense<0xFF800000> : vector<2x8xf32>
    %80 = vector.multi_reduction <maximumf>, %79, %cst_30 [2] : vector<2x8x8xf32> to vector<2x8xf32>
    %81 = vector.shape_cast %80 : vector<2x8xf32> to vector<2x8x1xf32>
    %82 = vector.broadcast %81 : vector<2x8x1xf32> to vector<2x8x8xf32>
    %83 = arith.subf %79, %82 : vector<2x8x8xf32>
    %84 = math.exp %83 : vector<2x8x8xf32>
    %cst_31 = arith.constant dense<0.000000e+00> : vector<2x8xf32>
    %85 = vector.multi_reduction <add>, %84, %cst_31 [2] : vector<2x8x8xf32> to vector<2x8xf32>
    %86 = vector.shape_cast %85 : vector<2x8xf32> to vector<2x8x1xf32>
    %87 = tpu.reciprocal %86 {approx = true} : vector<2x8x1xf32> -> vector<2x8x1xf32>
    %88 = vector.broadcast %87 : vector<2x8x1xf32> to vector<2x8x8xf32>
    %89 = arith.mulf %84, %88 : vector<2x8x8xf32>
    %90 = arith.truncf %89 : vector<2x8x8xf32> to vector<2x8x8xbf16>
    "tpu.trace_start"() <{level = 10 : i32, message = "bqk,bkd->bqd"}> : () -> ()
    %cst_32 = arith.constant dense<0.000000e+00> : vector<2x8x8xf32>
    %91 = tpu.matmul %90, %76, %cst_32 {dimension_numbers = #tpu.dot_dimension_numbers<[2], [1], [1], [2], [0, 0, 0, 1, 1, 2], [0], [0]>} : vector<2x8x8xbf16>, vector<2x8x8xbf16>, vector<2x8x8xf32> -> vector<2x8x8xf32>
    "tpu.trace_stop"() : () -> ()
    %92 = vector.shape_cast %91 : vector<2x8x8xf32> to vector<16x8xf32>
    %93 = vector.extract_strided_slice %31 {offsets = [0, 0, 24], sizes = [2, 8, 8], strides = [1, 1, 1]} : vector<2x8x32xbf16> to vector<2x8x8xbf16>
    %94 = vector.extract_strided_slice %33 {offsets = [0, 0, 24], sizes = [2, 8, 8], strides = [1, 1, 1]} : vector<2x8x32xbf16> to vector<2x8x8xbf16>
    %95 = vector.extract_strided_slice %35 {offsets = [0, 0, 24], sizes = [2, 8, 8], strides = [1, 1, 1]} : vector<2x8x32xbf16> to vector<2x8x8xbf16>
    "tpu.trace_start"() <{level = 10 : i32, message = "bqd,bkd->bqk"}> : () -> ()
    %cst_33 = arith.constant dense<0.000000e+00> : vector<2x8x8xf32>
    %96 = tpu.matmul %93, %94, %cst_33 {dimension_numbers = #tpu.dot_dimension_numbers<[2], [2], [1], [1], [0, 0, 0, 1, 1, 1], [0], [0]>} : vector<2x8x8xbf16>, vector<2x8x8xbf16>, vector<2x8x8xf32> -> vector<2x8x8xf32>
    "tpu.trace_stop"() : () -> ()
    %cst_34 = arith.constant 0.353553385 : f32
    %97 = vector.broadcast %cst_34 : f32 to vector<2x8x8xf32>
    %98 = arith.mulf %96, %97 : vector<2x8x8xf32>
    %cst_35 = arith.constant dense<0xFF800000> : vector<2x8xf32>
    %99 = vector.multi_reduction <maximumf>, %98, %cst_35 [2] : vector<2x8x8xf32> to vector<2x8xf32>
    %100 = vector.shape_cast %99 : vector<2x8xf32> to vector<2x8x1xf32>
    %101 = vector.broadcast %100 : vector<2x8x1xf32> to vector<2x8x8xf32>
    %102 = arith.subf %98, %101 : vector<2x8x8xf32>
    %103 = math.exp %102 : vector<2x8x8xf32>
    %cst_36 = arith.constant dense<0.000000e+00> : vector<2x8xf32>
    %104 = vector.multi_reduction <add>, %103, %cst_36 [2] : vector<2x8x8xf32> to vector<2x8xf32>
    %105 = vector.shape_cast %104 : vector<2x8xf32> to vector<2x8x1xf32>
    %106 = tpu.reciprocal %105 {approx = true} : vector<2x8x1xf32> -> vector<2x8x1xf32>
    %107 = vector.broadcast %106 : vector<2x8x1xf32> to vector<2x8x8xf32>
    %108 = arith.mulf %103, %107 : vector<2x8x8xf32>
    %109 = arith.truncf %108 : vector<2x8x8xf32> to vector<2x8x8xbf16>
    "tpu.trace_start"() <{level = 10 : i32, message = "bqk,bkd->bqd"}> : () -> ()
    %cst_37 = arith.constant dense<0.000000e+00> : vector<2x8x8xf32>
    %110 = tpu.matmul %109, %95, %cst_37 {dimension_numbers = #tpu.dot_dimension_numbers<[2], [1], [1], [2], [0, 0, 0, 1, 1, 2], [0], [0]>} : vector<2x8x8xbf16>, vector<2x8x8xbf16>, vector<2x8x8xf32> -> vector<2x8x8xf32>
    "tpu.trace_stop"() : () -> ()
    %111 = vector.shape_cast %110 : vector<2x8x8xf32> to vector<16x8xf32>
    %112 = tpu.concatenate %54, %73, %92, %111 in 1 : vector<16x8xf32>, vector<16x8xf32>, vector<16x8xf32>, vector<16x8xf32> -> vector<16x32xf32>
    %113 = arith.truncf %112 : vector<16x32xf32> to vector<16x32xbf16>
    %cst_38 = arith.constant dense<0.000000e+00> : vector<16x32xf32>
    %114 = tpu.matmul %113, %4, %cst_38 {dimension_numbers = #tpu.dot_dimension_numbers<[1], [0], [0], [1], [0, 0, 1, 1], [], []>} : vector<16x32xbf16>, vector<32x32xbf16>, vector<16x32xf32> -> vector<16x32xf32>
    %115 = vector.broadcast %12 : vector<1x32xf32> to vector<16x32xf32>
    %116 = arith.addf %114, %115 : vector<16x32xf32>
    %117 = arith.addf %0, %116 : vector<16x32xf32>
    %cst_39 = arith.constant dense<0.000000e+00> : vector<16xf32>
    %118 = vector.multi_reduction <add>, %117, %cst_39 [1] : vector<16x32xf32> to vector<16xf32>
    %119 = vector.shape_cast %118 : vector<16xf32> to vector<16x1xf32>
    %cst_40 = arith.constant 3.200000e+01 : f32
    %120 = vector.broadcast %cst_40 : f32 to vector<16x1xf32>
    %121 = arith.divf %119, %120 : vector<16x1xf32>
    %122 = vector.broadcast %121 : vector<16x1xf32> to vector<16x32xf32>
    %123 = arith.subf %117, %122 : vector<16x32xf32>
    %124 = arith.mulf %123, %123 : vector<16x32xf32>
    %cst_41 = arith.constant dense<0.000000e+00> : vector<16xf32>
    %125 = vector.multi_reduction <add>, %124, %cst_41 [1] : vector<16x32xf32> to vector<16xf32>
    %126 = vector.shape_cast %125 : vector<16xf32> to vector<16x1xf32>
    %cst_42 = arith.constant 3.200000e+01 : f32
    %127 = vector.broadcast %cst_42 : f32 to vector<16x1xf32>
    %128 = arith.divf %126, %127 : vector<16x1xf32>
    %cst_43 = arith.constant 9.99999974E-6 : f32
    %129 = vector.broadcast %cst_43 : f32 to vector<16x1xf32>
    %130 = arith.addf %128, %129 : vector<16x1xf32>
    %131 = math.rsqrt %130 : vector<16x1xf32>
    %132 = vector.broadcast %131 : vector<16x1xf32> to vector<16x32xf32>
    %133 = arith.mulf %123, %132 : vector<16x32xf32>
    %134 = vector.broadcast %13 : vector<1x32xf32> to vector<16x32xf32>
    %135 = arith.mulf %133, %134 : vector<16x32xf32>
    %136 = vector.broadcast %14 : vector<1x32xf32> to vector<16x32xf32>
    %137 = arith.addf %135, %136 : vector<16x32xf32>
    %138 = arith.truncf %137 : vector<16x32xf32> to vector<16x32xbf16>
    %cst_44 = arith.constant dense<0.000000e+00> : vector<16x64xf32>
    %139 = tpu.matmul %138, %6, %cst_44 {dimension_numbers = #tpu.dot_dimension_numbers<[1], [0], [0], [1], [0, 0, 1, 1], [], []>} : vector<16x32xbf16>, vector<32x64xbf16>, vector<16x64xf32> -> vector<16x64xf32>
    %140 = vector.broadcast %15 : vector<1x64xf32> to vector<16x64xf32>
    %141 = arith.addf %139, %140 : vector<16x64xf32>
    %cst_45 = arith.constant 0.000000e+00 : f32
    %142 = vector.broadcast %cst_45 : f32 to vector<16x64xf32>
    %143 = arith.maximumf %141, %142 : vector<16x64xf32>
    %144 = arith.truncf %143 : vector<16x64xf32> to vector<16x64xbf16>
    %cst_46 = arith.constant dense<0.000000e+00> : vector<16x32xf32>
    %145 = tpu.matmul %144, %8, %cst_46 {dimension_numbers = #tpu.dot_dimension_numbers<[1], [0], [0], [1], [0, 0, 1, 1], [], []>} : vector<16x64xbf16>, vector<64x32xbf16>, vector<16x32xf32> -> vector<16x32xf32>
    %146 = vector.broadcast %16 : vector<1x32xf32> to vector<16x32xf32>
    %147 = arith.addf %145, %146 : vector<16x32xf32>
    %148 = arith.addf %137, %147 : vector<16x32xf32>
    %cst_47 = arith.constant dense<0.000000e+00> : vector<16xf32>
    %149 = vector.multi_reduction <add>, %148, %cst_47 [1] : vector<16x32xf32> to vector<16xf32>
    %150 = vector.shape_cast %149 : vector<16xf32> to vector<16x1xf32>
    %cst_48 = arith.constant 3.200000e+01 : f32
    %151 = vector.broadcast %cst_48 : f32 to vector<16x1xf32>
    %152 = arith.divf %150, %151 : vector<16x1xf32>
    %153 = vector.broadcast %152 : vector<16x1xf32> to vector<16x32xf32>
    %154 = arith.subf %148, %153 : vector<16x32xf32>
    %155 = arith.mulf %154, %154 : vector<16x32xf32>
    %cst_49 = arith.constant dense<0.000000e+00> : vector<16xf32>
    %156 = vector.multi_reduction <add>, %155, %cst_49 [1] : vector<16x32xf32> to vector<16xf32>
    %157 = vector.shape_cast %156 : vector<16xf32> to vector<16x1xf32>
    %cst_50 = arith.constant 3.200000e+01 : f32
    %158 = vector.broadcast %cst_50 : f32 to vector<16x1xf32>
    %159 = arith.divf %157, %158 : vector<16x1xf32>
    %cst_51 = arith.constant 9.99999974E-6 : f32
    %160 = vector.broadcast %cst_51 : f32 to vector<16x1xf32>
    %161 = arith.addf %159, %160 : vector<16x1xf32>
    %162 = math.rsqrt %161 : vector<16x1xf32>
    %163 = vector.broadcast %162 : vector<16x1xf32> to vector<16x32xf32>
    %164 = arith.mulf %154, %163 : vector<16x32xf32>
    %165 = vector.broadcast %17 : vector<1x32xf32> to vector<16x32xf32>
    %166 = arith.mulf %164, %165 : vector<16x32xf32>
    %167 = vector.broadcast %18 : vector<1x32xf32> to vector<16x32xf32>
    %168 = arith.addf %166, %167 : vector<16x32xf32>
    %c0_52 = arith.constant 0 : index
    %c0_53 = arith.constant 0 : index
    %169 = vector.load %arg5[%c0_52, %c0_53] : memref<16x32xf32, #tpu.memory_space<vmem>>, vector<16x32xf32>
    tpu.vector_store %arg5[%c0_52, %c0_53], %168 {strides = array<i32>} : memref<16x32xf32, #tpu.memory_space<vmem>>, vector<16x32xf32>,
    return
  }
  func.func @transform_0(%arg0: i32) -> (i32, i32) {
    %c0_i32 = arith.constant 0 : i32
    %c0_i32_0 = arith.constant 0 : i32
    return %arg0, %c0_i32 : i32, i32
  }
  func.func @transform_1(%arg0: i32) -> (i32, i32) {
    %c0_i32 = arith.constant 0 : i32
    %c0_i32_0 = arith.constant 0 : i32
    %c0_i32_1 = arith.constant 0 : i32
    return %c0_i32, %c0_i32_0 : i32, i32
  }
  func.func @transform_2(%arg0: i32) -> (i32, i32) {
    %c0_i32 = arith.constant 0 : i32
    %c0_i32_0 = arith.constant 0 : i32
    %c0_i32_1 = arith.constant 0 : i32
    return %c0_i32, %c0_i32_0 : i32, i32
  }
  func.func @transform_3(%arg0: i32) -> (i32, i32) {
    %c0_i32 = arith.constant 0 : i32
    %c0_i32_0 = arith.constant 0 : i32
    %c0_i32_1 = arith.constant 0 : i32
    return %c0_i32, %c0_i32_0 : i32, i32
  }
  func.func @transform_4(%arg0: i32) -> (i32, i32) {
    %c0_i32 = arith.constant 0 : i32
    %c0_i32_0 = arith.constant 0 : i32
    return %arg0, %c0_i32 : i32, i32
  }
}

</mosaic_0001>

<llo_original>
// kernel: encoder_unit.1
$region0: #{encoder_unit.1}
  #allocation0 [shape = 'u32[]', space=smem, size = 0x4, offset = 0x4, fixed_abs, tag = 'smem constant byte address 0x4 - core index']
  #allocation1 [shape = 'u32[144,128]{1,0:T(1,128)}', space=vmem, size = 0x12000, scoped, tag = 'internal scratch']
  %s0 = inlined_call_operand.vmem [shape: f32[16,32], index: 0, kind: input, shape index: {}]
  %s1 = inlined_call_operand.vmem [shape: f32[32,192], index: 1, kind: input, shape index: {}]
  %s2 = inlined_call_operand.vmem [shape: f32[64,32], index: 2, kind: input, shape index: {}]
  %s3 = inlined_call_operand.vmem [shape: f32[10,64], index: 3, kind: input, shape index: {}]
  %s4 = inlined_call_operand.hbm [shape: f32[16,32], index: 4, kind: output, shape index: {}]
  %s5 = sld [smem:[#allocation0]]
  $region26: #{encoder_unit.1} parent=0
    _
  %s7 = ssub.s32 1, %s5
  %s8 = scalar_select 0, %s7, %s5
  $region1: #{encoder_unit.1} parent=0
    #allocation2 [shape = 'u8[8192]{0}', space=vmem, size = 0x2000, scoped, tag = 'output window, operand 0, single buffered']
    #allocation3 [shape = 's32[1]{0}', space=sflag, size = 0x4, scoped, tag = 'scoped memory for encoder_unit.1']
    %9 = vsyncpa [#allocation3], 0
    // Predicated region
    $region2: #{encoder_unit.1} parent=1 // pred_check
      _
    $region3: #{encoder_unit.1} parent=1 // pred_check_branch
      %11 = sbr.rel (0) target = $region5
    $region4: #{encoder_unit.1} parent=1 // pred_region
      _
    $region5: #{encoder_unit.1} parent=1 // pred_fallthru
      _
    // Predicated region
    $region6: #{encoder_unit.1} parent=1 // pred_check
      _
    $region7: #{encoder_unit.1} parent=1 // pred_check_branch
      %13 = sbr.rel (0) target = $region9
    $region8: #{encoder_unit.1} parent=1 // pred_region
      _
    $region9: #{encoder_unit.1} parent=1 // pred_fallthru
      _
    // Predicated region
    $region10: #{encoder_unit.1} parent=1 // pred_check
      _
    $region11: #{encoder_unit.1} parent=1 // pred_check_branch
      %15 = sbr.rel (0) target = $region13
    $region12: #{encoder_unit.1} parent=1 // pred_region
      _
    $region13: #{encoder_unit.1} parent=1 // pred_fallthru
      _
    // Predicated region
    $region14: #{encoder_unit.1} parent=1 // pred_check
      _
    $region15: #{encoder_unit.1} parent=1 // pred_check_branch
      %17 = sbr.rel (0) target = $region17
    $region16: #{encoder_unit.1} parent=1 // pred_region
      _
    $region17: #{encoder_unit.1} parent=1 // pred_fallthru
      _
    %v19 = vld [vmem:[%s0] sm:$0xff]
    %v20 = vld [vmem:[%s0 + $0x8] sm:$0xff]
    %v21 = vld [vmem:[%s1] sm:$0xff]
    %v22 = vld [vmem:[%s1 + $0x10] sm:$0xff]
    %v23 = vld [vmem:[%s1 + $0x20] sm:$0xff]
    %v24 = vld [vmem:[%s1 + $0x30] sm:$0xff]
    %v25 = vpack.c.bf16 %v22, %v21
    %v26 = vpack.c.bf16 %v24, %v23
    %v27 = vld [vmem:[%s1 + $0x8] sm:$0xff]
    %v28 = vld [vmem:[%s1 + $0x18] sm:$0xff]
    %v29 = vld [vmem:[%s1 + $0x28] sm:$0xff]
    %v30 = vld [vmem:[%s1 + $0x38] sm:$0xff]
    %v31 = vpack.c.bf16 %v28, %v27
    %v32 = vpack.c.bf16 %v30, %v29
    %v33 = vld [vmem:[%s2] sm:$0xff]
    %v34 = vld [vmem:[%s2 + $0x8] sm:$0xff]
    %v35 = vld [vmem:[%s2 + $0x10] sm:$0xff]
    %v36 = vld [vmem:[%s2 + $0x18] sm:$0xff]
    %v37 = vld [vmem:[%s2 + $0x20] sm:$0xff]
    %v38 = vld [vmem:[%s2 + $0x28] sm:$0xff]
    %v39 = vld [vmem:[%s2 + $0x30] sm:$0xff]
    %v40 = vld [vmem:[%s2 + $0x38] sm:$0xff]
    %v41 = vpack.c.bf16 %v34, %v33
    %v42 = vpack.c.bf16 %v36, %v35
    %v43 = vpack.c.bf16 %v38, %v37
    %v44 = vpack.c.bf16 %v40, %v39
    %v45 = vld [vmem:[%s3] sm:$0x1]
    %v46 = vld [vmem:[%s3 + $0x1] sm:$0x1]
    %v47 = vld [vmem:[%s3 + $0x2] sm:$0x1]
    %v48 = vld [vmem:[%s3 + $0x3] sm:$0x1]
    %v49 = vld [vmem:[%s3 + $0x4] sm:$0x1]
    %v50 = vld [vmem:[%s3 + $0x5] sm:$0x1]
    %v51 = vld [vmem:[%s3 + $0x6] sm:$0x1]
    %v52 = vld [vmem:[%s3 + $0x7] sm:$0x1]
    %v53 = vld [vmem:[%s3 + $0x8] sm:$0x1]
    %v54 = vld [vmem:[%s3 + $0x9] sm:$0x1]
    %v55 = vpack.c.bf16 %v20, %v19
    %vm56 = vcmask 261120
    %v58 = vsel %vm56, %v55, 0
    %60 = vmatprep.subr.bf16.mxu0 0
    %61 = vmatpush1.bf16.msra.mxu0 %v25
    %62 = vmatprep.subr.bf16.mxu0 0
    %63 = vmatpush1.bf16.msra.mxu0 %v26
    %64 = vmatprep.subr.bf16.mxu0 0
    %65 = vmatpush1.bf16.msra.mxu0 0
    %66 = vmatprep.subr.bf16.mxu0 0
    %67 = vmatpush1.bf16.msra.mxu0 0
    %68 = vmatprep.subr.bf16.mxu0 0
    %69 = vmatpush1.bf16.msra.mxu0 0
    %70 = vmatprep.subr.bf16.mxu0 0
    %71 = vmatpush1.bf16.msra.mxu0 0
    %72 = vmatprep.subr.bf16.mxu0 0
    %73 = vmatpush1.bf16.msra.mxu0 0
    %74 = vmatprep.subr.bf16.mxu0 0
    %75 = vmatpush1.bf16.msra.mxu0 0
    %76 = vmatprep.subr.bf16.mxu0 0
    %77 = vmatpush1.bf16.msra.mxu0 0
    %78 = vmatprep.subr.bf16.mxu0 0
    %79 = vmatpush1.bf16.msra.mxu0 0
    %80 = vmatprep.subr.bf16.mxu0 0
    %81 = vmatpush1.bf16.msra.mxu0 0
    %82 = vmatprep.subr.bf16.mxu0 0
    %83 = vmatpush1.bf16.msra.mxu0 0
    %84 = vmatprep.subr.bf16.mxu0 0
    %85 = vmatpush1.bf16.msra.mxu0 0
    %86 = vmatprep.subr.bf16.mxu0 0
    %87 = vmatpush1.bf16.msra.mxu0 0
    %88 = vmatprep.subr.bf16.mxu0 0
    %89 = vmatpush1.bf16.msra.mxu0 0
    %90 = vmatprep.subr.bf16.mxu0 0
    %91 = vmatpush1.bf16.msra.mxu0 0
    %92 = vmatprep.mubr.bf16.mxu0 0
    %93 = vmatmul.mubr.bf16.gmra.mrb[0].mxu0 %v58
    %v94 = vpop.f32.mrb[0].mxu0
    %v95 = vadd.f32 0.0, %v94
    %v96 = vpop.f32.mrb[0].mxu0
    %v97 = vpop.f32.mrb[0].mxu0
    %v98 = vadd.f32 0.0, %v97
    %v99 = vpop.f32.mrb[0].mxu0
    %100 = vdwg.mxu0
    %v101 = vlaneseq
    %v102 = vshrl.u32 %v101, 7
    %v103 = vsub.s32 0, %v102
    %v104 = vrot.slane %v45, %v103
    %v105 = vadd.f32 %v95, %v104
    %v106 = vadd.f32 %v98, %v104
    %v107 = vlaneseq
    %v108 = vshrl.u32 %v107, 7
    %v109 = vsub.s32 0, %v108
    %v110 = vrot.slane %v46, %v109
    %112 = vrot.lane.b32.xlu0 %v110, 32
    %v113 = vpop.permute.xlu0 %112
    %v115 = vadd.f32 %v95, %v113
    %v116 = vadd.f32 %v98, %v113
    %v117 = vlaneseq
    %v118 = vshrl.u32 %v117, 7
    %v119 = vsub.s32 0, %v118
    %v120 = vrot.slane %v47, %v119
    %122 = vrot.lane.b32.xlu0 %v120, 64
    %v123 = vpop.permute.xlu0 %122
    %v125 = vadd.f32 %v95, %v123
    %v126 = vadd.f32 %v98, %v123
    %v127 = vpack.c.bf16 %v106, %v105
    %v129 = vunpack.c.l.b16 %v127
    %v130 = vunpack.c.h.b16 %v127
    %v131 = vpack.c.b16 %v129, %v129
    %v132 = vpack.c.b16 %v130, %v130
    %v133 = vpack.c.bf16 %v116, %v115
    %v135 = vunpack.c.l.b16 %v133
    %v136 = vunpack.c.h.b16 %v133
    %v137 = vpack.c.bf16 %v126, %v125
    %v139 = vunpack.c.l.b16 %v137
    %v140 = vunpack.c.h.b16 %v137
    %v141 = vpack.c.b16 %v135, %v135
    %142 = vrot.lane.b32.xlu0 %v141, 96
    %v143 = vpop.permute.xlu0 %142
    %vm144 = vcmask 64512
    %v146 = vsel %vm144, %v131, 0
    %v149 = vsel %vm144, %v143, 0
    %151 = vmatprep.subr.bf16.mxu0 0
    %152 = vmatpush1.bf16.xpose.msra.mxu0 %v149
    %153 = vmatprep.subr.bf16.mxu0 0
    %154 = vmatpush1.bf16.xpose.msra.mxu0 0
    %155 = vmatprep.subr.bf16.mxu0 0
    %156 = vmatpush1.bf16.xpose.msra.mxu0 0
    %157 = vmatprep.subr.bf16.mxu0 0
    %158 = vmatpush1.bf16.xpose.msra.mxu0 0
    %159 = vmatprep.subr.bf16.mxu0 0
    %160 = vmatpush1.bf16.xpose.msra.mxu0 0
    %161 = vmatprep.subr.bf16.mxu0 0
    %162 = vmatpush1.bf16.xpose.msra.mxu0 0
    %163 = vmatprep.subr.bf16.mxu0 0
    %164 = vmatpush1.bf16.xpose.msra.mxu0 0
    %165 = vmatprep.subr.bf16.mxu0 0
    %166 = vmatpush1.bf16.xpose.msra.mxu0 0
    %167 = vmatprep.subr.bf16.mxu0 0
    %168 = vmatpush1.bf16.xpose.msra.mxu0 0
    %169 = vmatprep.subr.bf16.mxu0 0
    %170 = vmatpush1.bf16.xpose.msra.mxu0 0
    %171 = vmatprep.subr.bf16.mxu0 0
    %172 = vmatpush1.bf16.xpose.msra.mxu0 0
    %173 = vmatprep.subr.bf16.mxu0 0
    %174 = vmatpush1.bf16.xpose.msra.mxu0 0
    %175 = vmatprep.subr.bf16.mxu0 0
    %176 = vmatpush1.bf16.xpose.msra.mxu0 0
    %177 = vmatprep.subr.bf16.mxu0 0
    %178 = vmatpush1.bf16.xpose.msra.mxu0 0
    %179 = vmatprep.subr.bf16.mxu0 0
    %180 = vmatpush1.bf16.xpose.msra.mxu0 0
    %181 = vmatprep.subr.bf16.mxu0 0
    %182 = vmatpush1.bf16.xpose.msra.mxu0 0
    %183 = vmatprep.mubr.bf16.mxu0 0
    %184 = vmatmul.mubr.bf16.gmra.mrb[0].mxu0 %v146
    %v185 = vpop.f32.mrb[0].mxu0
    %v186 = vadd.f32 0.0, %v185
    %v187 = vpop.f32.mrb[0].mxu0
    %v188 = vpop.f32.mrb[0].mxu0
    %v189 = vpop.f32.mrb[0].mxu0
    %190 = vdwg.mxu0
    %v191 = vpack.c.b16 %v136, %v136
    %192 = vrot.lane.b32.xlu0 %v191, 96
    %v193 = vpop.permute.xlu0 %192
    %v195 = vsel %vm144, %v132, 0
    %v198 = vsel %vm144, %v193, 0
    %200 = vmatprep.subr.bf16.mxu0 0
    %201 = vmatpush1.bf16.xpose.msra.mxu0 %v198
    %202 = vmatprep.subr.bf16.mxu0 0
    %203 = vmatpush1.bf16.xpose.msra.mxu0 0
    %204 = vmatprep.subr.bf16.mxu0 0
    %205 = vmatpush1.bf16.xpose.msra.mxu0 0
    %206 = vmatprep.subr.bf16.mxu0 0
    %207 = vmatpush1.bf16.xpose.msra.mxu0 0
    %208 = vmatprep.subr.bf16.mxu0 0
    %209 = vmatpush1.bf16.xpose.msra.mxu0 0
    %210 = vmatprep.subr.bf16.mxu0 0
    %211 = vmatpush1.bf16.xpose.msra.mxu0 0
    %212 = vmatprep.subr.bf16.mxu0 0
    %213 = vmatpush1.bf16.xpose.msra.mxu0 0
    %214 = vmatprep.subr.bf16.mxu0 0
    %215 = vmatpush1.bf16.xpose.msra.mxu0 0
    %216 = vmatprep.subr.bf16.mxu0 0
    %217 = vmatpush1.bf16.xpose.msra.mxu0 0
    %218 = vmatprep.subr.bf16.mxu0 0
    %219 = vmatpush1.bf16.xpose.msra.mxu0 0
    %220 = vmatprep.subr.bf16.mxu0 0
    %221 = vmatpush1.bf16.xpose.msra.mxu0 0
    %222 = vmatprep.subr.bf16.mxu0 0
    %223 = vmatpush1.bf16.xpose.msra.mxu0 0
    %224 = vmatprep.subr.bf16.mxu0 0
    %225 = vmatpush1.bf16.xpose.msra.mxu0 0
    %226 = vmatprep.subr.bf16.mxu0 0
    %227 = vmatpush1.bf16.xpose.msra.mxu0 0
    %228 = vmatprep.subr.bf16.mxu0 0
    %229 = vmatpush1.bf16.xpose.msra.mxu0 0
    %230 = vmatprep.subr.bf16.mxu0 0
    %231 = vmatpush1.bf16.xpose.msra.mxu0 0
    %232 = vmatprep.mubr.bf16.mxu0 0
    %233 = vmatmul.mubr.bf16.gmra.mrb[0].mxu0 %v195
    %v234 = vpop.f32.mrb[0].mxu0
    %v235 = vadd.f32 0.0, %v234
    %v236 = vpop.f32.mrb[0].mxu0
    %v237 = vpop.f32.mrb[0].mxu0
    %v238 = vpop.f32.mrb[0].mxu0
    %239 = vdwg.mxu0
    %v240 = vmul.f32 %v186, 0.35355338
    %v241 = vmul.f32 %v235, 0.35355338
    %v242 = vsel %vm144, %v240, -inf
    %243 = vmax.xlane.f32.xlu0 %v242
    %v244 = vpop.xlane.xlu0 %243
    %v245 = vsel %vm144, %v241, -inf
    %246 = vmax.xlane.f32.xlu0 %v245
    %v247 = vpop.xlane.xlu0 %246
    %v248 = vsub.f32 %v240, %v244
    %v249 = vsub.f32 %v241, %v247
    %v250 = vmul.f32 %v248, 1.442695
    %v251 = vpow.pop %v250
    %v252 = vmul.f32 %v249, 1.442695
    %v253 = vpow.pop %v252
    %v254 = vsel %vm144, %v251, 0.0
    %255 = vadd.xlane.f32.xlu0 %v254
    %v256 = vpop.xlane.xlu0 %255
    %v257 = vsel %vm144, %v253, 0.0
    %258 = vadd.xlane.f32.xlu0 %v257
    %v259 = vpop.xlane.xlu0 %258
    %v260 = vrcp.pop %v256
    %v261 = vrcp.pop %v259
    %v262 = vmul.f32 %v251, %v260
    %v263 = vmul.f32 %v253, %v261
    %v264 = vpack.c.bf16 %v262, %v262
    %v265 = vpack.c.bf16 %v263, %v263
    %v266 = vpack.c.b16 %v139, %v139
    %267 = vrot.lane.b32.xlu0 %v266, 64
    %v268 = vpop.permute.xlu0 %267
    %v270 = vsel %vm144, %v264, 0
    %vm272 = vcmask 1043456
    %v274 = vsel %vm272, %v268, 0
    %276 = vmatprep.subr.bf16.mxu0 0
    %277 = vmatpush1.bf16.msra.mxu0 %v274
    %278 = vmatprep.subr.bf16.mxu0 0
    %279 = vmatpush1.bf16.msra.mxu0 0
    %280 = vmatprep.subr.bf16.mxu0 0
    %281 = vmatpush1.bf16.msra.mxu0 0
    %282 = vmatprep.subr.bf16.mxu0 0
    %283 = vmatpush1.bf16.msra.mxu0 0
    %284 = vmatprep.subr.bf16.mxu0 0
    %285 = vmatpush1.bf16.msra.mxu0 0
    %286 = vmatprep.subr.bf16.mxu0 0
    %287 = vmatpush1.bf16.msra.mxu0 0
    %288 = vmatprep.subr.bf16.mxu0 0
    %289 = vmatpush1.bf16.msra.mxu0 0
    %290 = vmatprep.subr.bf16.mxu0 0
    %291 = vmatpush1.bf16.msra.mxu0 0
    %292 = vmatprep.subr.bf16.mxu0 0
    %293 = vmatpush1.bf16.msra.mxu0 0
    %294 = vmatprep.subr.bf16.mxu0 0
    %295 = vmatpush1.bf16.msra.mxu0 0
    %296 = vmatprep.subr.bf16.mxu0 0
    %297 = vmatpush1.bf16.msra.mxu0 0
    %298 = vmatprep.subr.bf16.mxu0 0
    %299 = vmatpush1.bf16.msra.mxu0 0
    %300 = vmatprep.subr.bf16.mxu0 0
    %301 = vmatpush1.bf16.msra.mxu0 0
    %302 = vmatprep.subr.bf16.mxu0 0
    %303 = vmatpush1.bf16.msra.mxu0 0
    %304 = vmatprep.subr.bf16.mxu0 0
    %305 = vmatpush1.bf16.msra.mxu0 0
    %306 = vmatprep.subr.bf16.mxu0 0
    %307 = vmatpush1.bf16.msra.mxu0 0
    %308 = vmatprep.mubr.bf16.mxu0 0
    %309 = vmatmul.mubr.bf16.gmra.mrb[0].mxu0 %v270
    %v310 = vpop.f32.mrb[0].mxu0
    %v311 = vadd.f32 0.0, %v310
    %v312 = vpop.f32.mrb[0].mxu0
    %v313 = vpop.f32.mrb[0].mxu0
    %v314 = vpop.f32.mrb[0].mxu0
    %315 = vdwg.mxu0
    %v316 = vpack.c.b16 %v140, %v140
    %317 = vrot.lane.b32.xlu0 %v316, 64
    %v318 = vpop.permute.xlu0 %317
    %v320 = vsel %vm144, %v265, 0
    %v323 = vsel %vm272, %v318, 0
    %325 = vmatprep.subr.bf16.mxu0 0
    %326 = vmatpush1.bf16.msra.mxu0 %v323
    %327 = vmatprep.subr.bf16.mxu0 0
    %328 = vmatpush1.bf16.msra.mxu0 0
    %329 = vmatprep.subr.bf16.mxu0 0
    %330 = vmatpush1.bf16.msra.mxu0 0
    %331 = vmatprep.subr.bf16.mxu0 0
    %332 = vmatpush1.bf16.msra.mxu0 0
    %333 = vmatprep.subr.bf16.mxu0 0
    %334 = vmatpush1.bf16.msra.mxu0 0
    %335 = vmatprep.subr.bf16.mxu0 0
    %336 = vmatpush1.bf16.msra.mxu0 0
    %337 = vmatprep.subr.bf16.mxu0 0
    %338 = vmatpush1.bf16.msra.mxu0 0
    %339 = vmatprep.subr.bf16.mxu0 0
    %340 = vmatpush1.bf16.msra.mxu0 0
    %341 = vmatprep.subr.bf16.mxu0 0
    %342 = vmatpush1.bf16.msra.mxu0 0
    %343 = vmatprep.subr.bf16.mxu0 0
    %344 = vmatpush1.bf16.msra.mxu0 0
    %345 = vmatprep.subr.bf16.mxu0 0
    %346 = vmatpush1.bf16.msra.mxu0 0
    %347 = vmatprep.subr.bf16.mxu0 0
    %348 = vmatpush1.bf16.msra.mxu0 0
    %349 = vmatprep.subr.bf16.mxu0 0
    %350 = vmatpush1.bf16.msra.mxu0 0
    %351 = vmatprep.subr.bf16.mxu0 0
    %352 = vmatpush1.bf16.msra.mxu0 0
    %353 = vmatprep.subr.bf16.mxu0 0
    %354 = vmatpush1.bf16.msra.mxu0 0
    %355 = vmatprep.subr.bf16.mxu0 0
    %356 = vmatpush1.bf16.msra.mxu0 0
    %357 = vmatprep.mubr.bf16.mxu0 0
    %358 = vmatmul.mubr.bf16.gmra.mrb[0].mxu0 %v320
    %v359 = vpop.f32.mrb[0].mxu0
    %v360 = vadd.f32 0.0, %v359
    %v361 = vpop.f32.mrb[0].mxu0
    %v362 = vpop.f32.mrb[0].mxu0
    %v363 = vpop.f32.mrb[0].mxu0
    %364 = vdwg.mxu0
    %365 = vrot.lane.b32.xlu0 %v131, 120
    %v366 = vpop.permute.xlu0 %365
    %367 = vrot.lane.b32.xlu0 %v141, 88
    %v368 = vpop.permute.xlu0 %367
    %v370 = vsel %vm144, %v366, 0
    %v373 = vsel %vm144, %v368, 0
    %375 = vmatprep.subr.bf16.mxu0 0
    %376 = vmatpush1.bf16.xpose.msra.mxu0 %v373
    %377 = vmatprep.subr.bf16.mxu0 0
    %378 = vmatpush1.bf16.xpose.msra.mxu0 0
    %379 = vmatprep.subr.bf16.mxu0 0
    %380 = vmatpush1.bf16.xpose.msra.mxu0 0
    %381 = vmatprep.subr.bf16.mxu0 0
    %382 = vmatpush1.bf16.xpose.msra.mxu0 0
    %383 = vmatprep.subr.bf16.mxu0 0
    %384 = vmatpush1.bf16.xpose.msra.mxu0 0
    %385 = vmatprep.subr.bf16.mxu0 0
    %386 = vmatpush1.bf16.xpose.msra.mxu0 0
    %387 = vmatprep.subr.bf16.mxu0 0
    %388 = vmatpush1.bf16.xpose.msra.mxu0 0
    %389 = vmatprep.subr.bf16.mxu0 0
    %390 = vmatpush1.bf16.xpose.msra.mxu0 0
    %391 = vmatprep.subr.bf16.mxu0 0
    %392 = vmatpush1.bf16.xpose.msra.mxu0 0
    %393 = vmatprep.subr.bf16.mxu0 0
    %394 = vmatpush1.bf16.xpose.msra.mxu0 0
    %395 = vmatprep.subr.bf16.mxu0 0
    %396 = vmatpush1.bf16.xpose.msra.mxu0 0
    %397 = vmatprep.subr.bf16.mxu0 0
    %398 = vmatpush1.bf16.xpose.msra.mxu0 0
    %399 = vmatprep.subr.bf16.mxu0 0
    %400 = vmatpush1.bf16.xpose.msra.mxu0 0
    %401 = vmatprep.subr.bf16.mxu0 0
    %402 = vmatpush1.bf16.xpose.msra.mxu0 0
    %403 = vmatprep.subr.bf16.mxu0 0
    %404 = vmatpush1.bf16.xpose.msra.mxu0 0
    %405 = vmatprep.subr.bf16.mxu0 0
    %406 = vmatpush1.bf16.xpose.msra.mxu0 0
    %407 = vmatprep.mubr.bf16.mxu0 0
    %408 = vmatmul.mubr.bf16.gmra.mrb[0].mxu0 %v370
    %v409 = vpop.f32.mrb[0].mxu0
    %v410 = vadd.f32 0.0, %v409
    %v411 = vpop.f32.mrb[0].mxu0
    %v412 = vpop.f32.mrb[0].mxu0
    %v413 = vpop.f32.mrb[0].mxu0
    %414 = vdwg.mxu0
    %415 = vrot.lane.b32.xlu0 %v132, 120
    %v416 = vpop.permute.xlu0 %415
    %417 = vrot.lane.b32.xlu0 %v191, 88
    %v418 = vpop.permute.xlu0 %417
    %v420 = vsel %vm144, %v416, 0
    %v423 = vsel %vm144, %v418, 0
    %425 = vmatprep.subr.bf16.mxu0 0
    %426 = vmatpush1.bf16.xpose.msra.mxu0 %v423
    %427 = vmatprep.subr.bf16.mxu0 0
    %428 = vmatpush1.bf16.xpose.msra.mxu0 0
    %429 = vmatprep.subr.bf16.mxu0 0
    %430 = vmatpush1.bf16.xpose.msra.mxu0 0
    %431 = vmatprep.subr.bf16.mxu0 0
    %432 = vmatpush1.bf16.xpose.msra.mxu0 0
    %433 = vmatprep.subr.bf16.mxu0 0
    %434 = vmatpush1.bf16.xpose.msra.mxu0 0
    %435 = vmatprep.subr.bf16.mxu0 0
    %436 = vmatpush1.bf16.xpose.msra.mxu0 0
    %437 = vmatprep.subr.bf16.mxu0 0
    %438 = vmatpush1.bf16.xpose.msra.mxu0 0
    %439 = vmatprep.subr.bf16.mxu0 0
    %440 = vmatpush1.bf16.xpose.msra.mxu0 0
    %441 = vmatprep.subr.bf16.mxu0 0
    %442 = vmatpush1.bf16.xpose.msra.mxu0 0
    %443 = vmatprep.subr.bf16.mxu0 0
    %444 = vmatpush1.bf16.xpose.msra.mxu0 0
    %445 = vmatprep.subr.bf16.mxu0 0
    %446 = vmatpush1.bf16.xpose.msra.mxu0 0
    %447 = vmatprep.subr.bf16.mxu0 0
    %448 = vmatpush1.bf16.xpose.msra.mxu0 0
    %449 = vmatprep.subr.bf16.mxu0 0
    %450 = vmatpush1.bf16.xpose.msra.mxu0 0
    %451 = vmatprep.subr.bf16.mxu0 0
    %452 = vmatpush1.bf16.xpose.msra.mxu0 0
    %453 = vmatprep.subr.bf16.mxu0 0
    %454 = vmatpush1.bf16.xpose.msra.mxu0 0
    %455 = vmatprep.subr.bf16.mxu0 0
    %456 = vmatpush1.bf16.xpose.msra.mxu0 0
    %457 = vmatprep.mubr.bf16.mxu0 0
    %458 = vmatmul.mubr.bf16.gmra.mrb[0].mxu0 %v420
    %v459 = vpop.f32.mrb[0].mxu0
    %v460 = vadd.f32 0.0, %v459
    %v461 = vpop.f32.mrb[0].mxu0
    %v462 = vpop.f32.mrb[0].mxu0
    %v463 = vpop.f32.mrb[0].mxu0
    %464 = vdwg.mxu0
    %v465 = vmul.f32 %v410, 0.35355338
    %v466 = vmul.f32 %v460, 0.35355338
    %v467 = vsel %vm144, %v465, -inf
    %468 = vmax.xlane.f32.xlu0 %v467
    %v469 = vpop.xlane.xlu0 %468
    %v470 = vsel %vm144, %v466, -inf
    %471 = vmax.xlane.f32.xlu0 %v470
    %v472 = vpop.xlane.xlu0 %471
    %v473 = vsub.f32 %v465, %v469
    %v474 = vsub.f32 %v466, %v472
    %v475 = vmul.f32 %v473, 1.442695
    %v476 = vpow.pop %v475
    %v477 = vmul.f32 %v474, 1.442695
    %v478 = vpow.pop %v477
    %v479 = vsel %vm144, %v476, 0.0
    %480 = vadd.xlane.f32.xlu0 %v479
    %v481 = vpop.xlane.xlu0 %480
    %v482 = vsel %vm144, %v478, 0.0
    %483 = vadd.xlane.f32.xlu0 %v482
    %v484 = vpop.xlane.xlu0 %483
    %v485 = vrcp.pop %v481
    %v486 = vrcp.pop %v484
    %v487 = vmul.f32 %v476, %v485
    %v488 = vmul.f32 %v478, %v486
    %v489 = vpack.c.bf16 %v487, %v487
    %v490 = vpack.c.bf16 %v488, %v488
    %491 = vrot.lane.b32.xlu0 %v266, 56
    %v492 = vpop.permute.xlu0 %491
    %v494 = vsel %vm144, %v489, 0
    %v497 = vsel %vm272, %v492, 0
    %499 = vmatprep.subr.bf16.mxu0 0
    %500 = vmatpush1.bf16.msra.mxu0 %v497
    %501 = vmatprep.subr.bf16.mxu0 0
    %502 = vmatpush1.bf16.msra.mxu0 0
    %503 = vmatprep.subr.bf16.mxu0 0
    %504 = vmatpush1.bf16.msra.mxu0 0
    %505 = vmatprep.subr.bf16.mxu0 0
    %506 = vmatpush1.bf16.msra.mxu0 0
    %507 = vmatprep.subr.bf16.mxu0 0
    %508 = vmatpush1.bf16.msra.mxu0 0
    %509 = vmatprep.subr.bf16.mxu0 0
    %510 = vmatpush1.bf16.msra.mxu0 0
    %511 = vmatprep.subr.bf16.mxu0 0
    %512 = vmatpush1.bf16.msra.mxu0 0
    %513 = vmatprep.subr.bf16.mxu0 0
    %514 = vmatpush1.bf16.msra.mxu0 0
    %515 = vmatprep.subr.bf16.mxu0 0
    %516 = vmatpush1.bf16.msra.mxu0 0
    %517 = vmatprep.subr.bf16.mxu0 0
    %518 = vmatpush1.bf16.msra.mxu0 0
    %519 = vmatprep.subr.bf16.mxu0 0
    %520 = vmatpush1.bf16.msra.mxu0 0
    %521 = vmatprep.subr.bf16.mxu0 0
    %522 = vmatpush1.bf16.msra.mxu0 0
    %523 = vmatprep.subr.bf16.mxu0 0
    %524 = vmatpush1.bf16.msra.mxu0 0
    %525 = vmatprep.subr.bf16.mxu0 0
    %526 = vmatpush1.bf16.msra.mxu0 0
    %527 = vmatprep.subr.bf16.mxu0 0
    %528 = vmatpush1.bf16.msra.mxu0 0
    %529 = vmatprep.subr.bf16.mxu0 0
    %530 = vmatpush1.bf16.msra.mxu0 0
    %531 = vmatprep.mubr.bf16.mxu0 0
    %532 = vmatmul.mubr.bf16.gmra.mrb[0].mxu0 %v494
    %v533 = vpop.f32.mrb[0].mxu0
    %v534 = vadd.f32 0.0, %v533
    %v535 = vpop.f32.mrb[0].mxu0
    %v536 = vpop.f32.mrb[0].mxu0
    %v537 = vpop.f32.mrb[0].mxu0
    %538 = vdwg.mxu0
    %539 = vrot.lane.b32.xlu0 %v316, 56
    %v540 = vpop.permute.xlu0 %539
    %v542 = vsel %vm144, %v490, 0
    %v545 = vsel %vm272, %v540, 0
    %547 = vmatprep.subr.bf16.mxu0 0
    %548 = vmatpush1.bf16.msra.mxu0 %v545
    %549 = vmatprep.subr.bf16.mxu0 0
    %550 = vmatpush1.bf16.msra.mxu0 0
    %551 = vmatprep.subr.bf16.mxu0 0
    %552 = vmatpush1.bf16.msra.mxu0 0
    %553 = vmatprep.subr.bf16.mxu0 0
    %554 = vmatpush1.bf16.msra.mxu0 0
    %555 = vmatprep.subr.bf16.mxu0 0
    %556 = vmatpush1.bf16.msra.mxu0 0
    %557 = vmatprep.subr.bf16.mxu0 0
    %558 = vmatpush1.bf16.msra.mxu0 0
    %559 = vmatprep.subr.bf16.mxu0 0
    %560 = vmatpush1.bf16.msra.mxu0 0
    %561 = vmatprep.subr.bf16.mxu0 0
    %562 = vmatpush1.bf16.msra.mxu0 0
    %563 = vmatprep.subr.bf16.mxu0 0
    %564 = vmatpush1.bf16.msra.mxu0 0
    %565 = vmatprep.subr.bf16.mxu0 0
    %566 = vmatpush1.bf16.msra.mxu0 0
    %567 = vmatprep.subr.bf16.mxu0 0
    %568 = vmatpush1.bf16.msra.mxu0 0
    %569 = vmatprep.subr.bf16.mxu0 0
    %570 = vmatpush1.bf16.msra.mxu0 0
    %571 = vmatprep.subr.bf16.mxu0 0
    %572 = vmatpush1.bf16.msra.mxu0 0
    %573 = vmatprep.subr.bf16.mxu0 0
    %574 = vmatpush1.bf16.msra.mxu0 0
    %575 = vmatprep.subr.bf16.mxu0 0
    %576 = vmatpush1.bf16.msra.mxu0 0
    %577 = vmatprep.subr.bf16.mxu0 0
    %578 = vmatpush1.bf16.msra.mxu0 0
    %579 = vmatprep.mubr.bf16.mxu0 0
    %580 = vmatmul.mubr.bf16.gmra.mrb[0].mxu0 %v542
    %v581 = vpop.f32.mrb[0].mxu0
    %v582 = vadd.f32 0.0, %v581
    %v583 = vpop.f32.mrb[0].mxu0
    %v584 = vpop.f32.mrb[0].mxu0
    %v585 = vpop.f32.mrb[0].mxu0
    %586 = vdwg.mxu0
    %587 = vrot.lane.b32.xlu0 %v131, 112
    %v588 = vpop.permute.xlu0 %587
    %589 = vrot.lane.b32.xlu0 %v141, 80
    %v590 = vpop.permute.xlu0 %589
    %v592 = vsel %vm144, %v588, 0
    %v595 = vsel %vm144, %v590, 0
    %597 = vmatprep.subr.bf16.mxu0 0
    %598 = vmatpush1.bf16.xpose.msra.mxu0 %v595
    %599 = vmatprep.subr.bf16.mxu0 0
    %600 = vmatpush1.bf16.xpose.msra.mxu0 0
    %601 = vmatprep.subr.bf16.mxu0 0
    %602 = vmatpush1.bf16.xpose.msra.mxu0 0
    %603 = vmatprep.subr.bf16.mxu0 0
    %604 = vmatpush1.bf16.xpose.msra.mxu0 0
    %605 = vmatprep.subr.bf16.mxu0 0
    %606 = vmatpush1.bf16.xpose.msra.mxu0 0
    %607 = vmatprep.subr.bf16.mxu0 0
    %608 = vmatpush1.bf16.xpose.msra.mxu0 0
    %609 = vmatprep.subr.bf16.mxu0 0
    %610 = vmatpush1.bf16.xpose.msra.mxu0 0
    %611 = vmatprep.subr.bf16.mxu0 0
    %612 = vmatpush1.bf16.xpose.msra.mxu0 0
    %613 = vmatprep.subr.bf16.mxu0 0
    %614 = vmatpush1.bf16.xpose.msra.mxu0 0
    %615 = vmatprep.subr.bf16.mxu0 0
    %616 = vmatpush1.bf16.xpose.msra.mxu0 0
    %617 = vmatprep.subr.bf16.mxu0 0
    %618 = vmatpush1.bf16.xpose.msra.mxu0 0
    %619 = vmatprep.subr.bf16.mxu0 0
    %620 = vmatpush1.bf16.xpose.msra.mxu0 0
    %621 = vmatprep.subr.bf16.mxu0 0
    %622 = vmatpush1.bf16.xpose.msra.mxu0 0
    %623 = vmatprep.subr.bf16.mxu0 0
    %624 = vmatpush1.bf16.xpose.msra.mxu0 0
    %625 = vmatprep.subr.bf16.mxu0 0
    %626 = vmatpush1.bf16.xpose.msra.mxu0 0
    %627 = vmatprep.subr.bf16.mxu0 0
    %628 = vmatpush1.bf16.xpose.msra.mxu0 0
    %629 = vmatprep.mubr.bf16.mxu0 0
    %630 = vmatmul.mubr.bf16.gmra.mrb[0].mxu0 %v592
    %v631 = vpop.f32.mrb[0].mxu0
    %v632 = vadd.f32 0.0, %v631
    %v633 = vpop.f32.mrb[0].mxu0
    %v634 = vpop.f32.mrb[0].mxu0
    %v635 = vpop.f32.mrb[0].mxu0
    %636 = vdwg.mxu0
    %637 = vrot.lane.b32.xlu0 %v132, 112
    %v638 = vpop.permute.xlu0 %637
    %639 = vrot.lane.b32.xlu0 %v191, 80
    %v640 = vpop.permute.xlu0 %639
    %v642 = vsel %vm144, %v638, 0
    %v645 = vsel %vm144, %v640, 0
    %647 = vmatprep.subr.bf16.mxu0 0
    %648 = vmatpush1.bf16.xpose.msra.mxu0 %v645
    %649 = vmatprep.subr.bf16.mxu0 0
    %650 = vmatpush1.bf16.xpose.msra.mxu0 0
    %651 = vmatprep.subr.bf16.mxu0 0
    %652 = vmatpush1.bf16.xpose.msra.mxu0 0
    %653 = vmatprep.subr.bf16.mxu0 0
    %654 = vmatpush1.bf16.xpose.msra.mxu0 0
    %655 = vmatprep.subr.bf16.mxu0 0
    %656 = vmatpush1.bf16.xpose.msra.mxu0 0
    %657 = vmatprep.subr.bf16.mxu0 0
    %658 = vmatpush1.bf16.xpose.msra.mxu0 0
    %659 = vmatprep.subr.bf16.mxu0 0
    %660 = vmatpush1.bf16.xpose.msra.mxu0 0
    %661 = vmatprep.subr.bf16.mxu0 0
    %662 = vmatpush1.bf16.xpose.msra.mxu0 0
    %663 = vmatprep.subr.bf16.mxu0 0
    %664 = vmatpush1.bf16.xpose.msra.mxu0 0
    %665 = vmatprep.subr.bf16.mxu0 0
    %666 = vmatpush1.bf16.xpose.msra.mxu0 0
    %667 = vmatprep.subr.bf16.mxu0 0
    %668 = vmatpush1.bf16.xpose.msra.mxu0 0
    %669 = vmatprep.subr.bf16.mxu0 0
    %670 = vmatpush1.bf16.xpose.msra.mxu0 0
    %671 = vmatprep.subr.bf16.mxu0 0
    %672 = vmatpush1.bf16.xpose.msra.mxu0 0
    %673 = vmatprep.subr.bf16.mxu0 0
    %674 = vmatpush1.bf16.xpose.msra.mxu0 0
    %675 = vmatprep.subr.bf16.mxu0 0
    %676 = vmatpush1.bf16.xpose.msra.mxu0 0
    %677 = vmatprep.subr.bf16.mxu0 0
    %678 = vmatpush1.bf16.xpose.msra.mxu0 0
    %679 = vmatprep.mubr.bf16.mxu0 0
    %680 = vmatmul.mubr.bf16.gmra.mrb[0].mxu0 %v642
    %v681 = vpop.f32.mrb[0].mxu0
    %v682 = vadd.f32 0.0, %v681
    %v683 = vpop.f32.mrb[0].mxu0
    %v684 = vpop.f32.mrb[0].mxu0
    %v685 = vpop.f32.mrb[0].mxu0
    %686 = vdwg.mxu0
    %v687 = vmul.f32 %v632, 0.35355338
    %v688 = vmul.f32 %v682, 0.35355338
    %v689 = vsel %vm144, %v687, -inf
    %690 = vmax.xlane.f32.xlu0 %v689
    %v691 = vpop.xlane.xlu0 %690
    %v692 = vsel %vm144, %v688, -inf
    %693 = vmax.xlane.f32.xlu0 %v692
    %v694 = vpop.xlane.xlu0 %693
    %v695 = vsub.f32 %v687, %v691
    %v696 = vsub.f32 %v688, %v694
    %v697 = vmul.f32 %v695, 1.442695
    %v698 = vpow.pop %v697
    %v699 = vmul.f32 %v696, 1.442695
    %v700 = vpow.pop %v699
    %v701 = vsel %vm144, %v698, 0.0
    %702 = vadd.xlane.f32.xlu0 %v701
    %v703 = vpop.xlane.xlu0 %702
    %v704 = vsel %vm144, %v700, 0.0
    %705 = vadd.xlane.f32.xlu0 %v704
    %v706 = vpop.xlane.xlu0 %705
    %v707 = vrcp.pop %v703
    %v708 = vrcp.pop %v706
    %v709 = vmul.f32 %v698, %v707
    %v710 = vmul.f32 %v700, %v708
    %v711 = vpack.c.bf16 %v709, %v709
    %v712 = vpack.c.bf16 %v710, %v710
    %713 = vrot.lane.b32.xlu0 %v266, 48
    %v714 = vpop.permute.xlu0 %713
    %v716 = vsel %vm144, %v711, 0
    %v719 = vsel %vm272, %v714, 0
    %721 = vmatprep.subr.bf16.mxu0 0
    %722 = vmatpush1.bf16.msra.mxu0 %v719
    %723 = vmatprep.subr.bf16.mxu0 0
    %724 = vmatpush1.bf16.msra.mxu0 0
    %725 = vmatprep.subr.bf16.mxu0 0
    %726 = vmatpush1.bf16.msra.mxu0 0
    %727 = vmatprep.subr.bf16.mxu0 0
    %728 = vmatpush1.bf16.msra.mxu0 0
    %729 = vmatprep.subr.bf16.mxu0 0
    %730 = vmatpush1.bf16.msra.mxu0 0
    %731 = vmatprep.subr.bf16.mxu0 0
    %732 = vmatpush1.bf16.msra.mxu0 0
    %733 = vmatprep.subr.bf16.mxu0 0
    %734 = vmatpush1.bf16.msra.mxu0 0
    %735 = vmatprep.subr.bf16.mxu0 0
    %736 = vmatpush1.bf16.msra.mxu0 0
    %737 = vmatprep.subr.bf16.mxu0 0
    %738 = vmatpush1.bf16.msra.mxu0 0
    %739 = vmatprep.subr.bf16.mxu0 0
    %740 = vmatpush1.bf16.msra.mxu0 0
    %741 = vmatprep.subr.bf16.mxu0 0
    %742 = vmatpush1.bf16.msra.mxu0 0
    %743 = vmatprep.subr.bf16.mxu0 0
    %744 = vmatpush1.bf16.msra.mxu0 0
    %745 = vmatprep.subr.bf16.mxu0 0
    %746 = vmatpush1.bf16.msra.mxu0 0
    %747 = vmatprep.subr.bf16.mxu0 0
    %748 = vmatpush1.bf16.msra.mxu0 0
    %749 = vmatprep.subr.bf16.mxu0 0
    %750 = vmatpush1.bf16.msra.mxu0 0
    %751 = vmatprep.subr.bf16.mxu0 0
    %752 = vmatpush1.bf16.msra.mxu0 0
    %753 = vmatprep.mubr.bf16.mxu0 0
    %754 = vmatmul.mubr.bf16.gmra.mrb[0].mxu0 %v716
    %v755 = vpop.f32.mrb[0].mxu0
    %v756 = vadd.f32 0.0, %v755
    %v757 = vpop.f32.mrb[0].mxu0
    %v758 = vpop.f32.mrb[0].mxu0
    %v759 = vpop.f32.mrb[0].mxu0
    %760 = vdwg.mxu0
    %761 = vrot.lane.b32.xlu0 %v316, 48
    %v762 = vpop.permute.xlu0 %761
    %v764 = vsel %vm144, %v712, 0
    %v767 = vsel %vm272, %v762, 0
    %769 = vmatprep.subr.bf16.mxu0 0
    %770 = vmatpush1.bf16.msra.mxu0 %v767
    %771 = vmatprep.subr.bf16.mxu0 0
    %772 = vmatpush1.bf16.msra.mxu0 0
    %773 = vmatprep.subr.bf16.mxu0 0
    %774 = vmatpush1.bf16.msra.mxu0 0
    %775 = vmatprep.subr.bf16.mxu0 0
    %776 = vmatpush1.bf16.msra.mxu0 0
    %777 = vmatprep.subr.bf16.mxu0 0
    %778 = vmatpush1.bf16.msra.mxu0 0
    %779 = vmatprep.subr.bf16.mxu0 0
    %780 = vmatpush1.bf16.msra.mxu0 0
    %781 = vmatprep.subr.bf16.mxu0 0
    %782 = vmatpush1.bf16.msra.mxu0 0
    %783 = vmatprep.subr.bf16.mxu0 0
    %784 = vmatpush1.bf16.msra.mxu0 0
    %785 = vmatprep.subr.bf16.mxu0 0
    %786 = vmatpush1.bf16.msra.mxu0 0
    %787 = vmatprep.subr.bf16.mxu0 0
    %788 = vmatpush1.bf16.msra.mxu0 0
    %789 = vmatprep.subr.bf16.mxu0 0
    %790 = vmatpush1.bf16.msra.mxu0 0
    %791 = vmatprep.subr.bf16.mxu0 0
    %792 = vmatpush1.bf16.msra.mxu0 0
    %793 = vmatprep.subr.bf16.mxu0 0
    %794 = vmatpush1.bf16.msra.mxu0 0
    %795 = vmatprep.subr.bf16.mxu0 0
    %796 = vmatpush1.bf16.msra.mxu0 0
    %797 = vmatprep.subr.bf16.mxu0 0
    %798 = vmatpush1.bf16.msra.mxu0 0
    %799 = vmatprep.subr.bf16.mxu0 0
    %800 = vmatpush1.bf16.msra.mxu0 0
    %801 = vmatprep.mubr.bf16.mxu0 0
    %802 = vmatmul.mubr.bf16.gmra.mrb[0].mxu0 %v764
    %v803 = vpop.f32.mrb[0].mxu0
    %v804 = vadd.f32 0.0, %v803
    %v805 = vpop.f32.mrb[0].mxu0
    %v806 = vpop.f32.mrb[0].mxu0
    %v807 = vpop.f32.mrb[0].mxu0
    %808 = vdwg.mxu0
    %809 = vrot.lane.b32.xlu0 %v131, 104
    %v810 = vpop.permute.xlu0 %809
    %811 = vrot.lane.b32.xlu0 %v141, 72
    %v812 = vpop.permute.xlu0 %811
    %v814 = vsel %vm144, %v810, 0
    %v817 = vsel %vm144, %v812, 0
    %819 = vmatprep.subr.bf16.mxu0 0
    %820 = vmatpush1.bf16.xpose.msra.mxu0 %v817
    %821 = vmatprep.subr.bf16.mxu0 0
    %822 = vmatpush1.bf16.xpose.msra.mxu0 0
    %823 = vmatprep.subr.bf16.mxu0 0
    %824 = vmatpush1.bf16.xpose.msra.mxu0 0
    %825 = vmatprep.subr.bf16.mxu0 0
    %826 = vmatpush1.bf16.xpose.msra.mxu0 0
    %827 = vmatprep.subr.bf16.mxu0 0
    %828 = vmatpush1.bf16.xpose.msra.mxu0 0
    %829 = vmatprep.subr.bf16.mxu0 0
    %830 = vmatpush1.bf16.xpose.msra.mxu0 0
    %831 = vmatprep.subr.bf16.mxu0 0
    %832 = vmatpush1.bf16.xpose.msra.mxu0 0
    %833 = vmatprep.subr.bf16.mxu0 0
    %834 = vmatpush1.bf16.xpose.msra.mxu0 0
    %835 = vmatprep.subr.bf16.mxu0 0
    %836 = vmatpush1.bf16.xpose.msra.mxu0 0
    %837 = vmatprep.subr.bf16.mxu0 0
    %838 = vmatpush1.bf16.xpose.msra.mxu0 0
    %839 = vmatprep.subr.bf16.mxu0 0
    %840 = vmatpush1.bf16.xpose.msra.mxu0 0
    %841 = vmatprep.subr.bf16.mxu0 0
    %842 = vmatpush1.bf16.xpose.msra.mxu0 0
    %843 = vmatprep.subr.bf16.mxu0 0
    %844 = vmatpush1.bf16.xpose.msra.mxu0 0
    %845 = vmatprep.subr.bf16.mxu0 0
    %846 = vmatpush1.bf16.xpose.msra.mxu0 0
    %847 = vmatprep.subr.bf16.mxu0 0
    %848 = vmatpush1.bf16.xpose.msra.mxu0 0
    %849 = vmatprep.subr.bf16.mxu0 0
    %850 = vmatpush1.bf16.xpose.msra.mxu0 0
    %851 = vmatprep.mubr.bf16.mxu0 0
    %852 = vmatmul.mubr.bf16.gmra.mrb[0].mxu0 %v814
    %v853 = vpop.f32.mrb[0].mxu0
    %v854 = vadd.f32 0.0, %v853
    %v855 = vpop.f32.mrb[0].mxu0
    %v856 = vpop.f32.mrb[0].mxu0
    %v857 = vpop.f32.mrb[0].mxu0
    %858 = vdwg.mxu0
    %859 = vrot.lane.b32.xlu0 %v132, 104
    %v860 = vpop.permute.xlu0 %859
    %861 = vrot.lane.b32.xlu0 %v191, 72
    %v862 = vpop.permute.xlu0 %861
    %v864 = vsel %vm144, %v860, 0
    %v867 = vsel %vm144, %v862, 0
    %869 = vmatprep.subr.bf16.mxu0 0
    %870 = vmatpush1.bf16.xpose.msra.mxu0 %v867
    %871 = vmatprep.subr.bf16.mxu0 0
    %872 = vmatpush1.bf16.xpose.msra.mxu0 0
    %873 = vmatprep.subr.bf16.mxu0 0
    %874 = vmatpush1.bf16.xpose.msra.mxu0 0
    %875 = vmatprep.subr.bf16.mxu0 0
    %876 = vmatpush1.bf16.xpose.msra.mxu0 0
    %877 = vmatprep.subr.bf16.mxu0 0
    %878 = vmatpush1.bf16.xpose.msra.mxu0 0
    %879 = vmatprep.subr.bf16.mxu0 0
    %880 = vmatpush1.bf16.xpose.msra.mxu0 0
    %881 = vmatprep.subr.bf16.mxu0 0
    %882 = vmatpush1.bf16.xpose.msra.mxu0 0
    %883 = vmatprep.subr.bf16.mxu0 0
    %884 = vmatpush1.bf16.xpose.msra.mxu0 0
    %885 = vmatprep.subr.bf16.mxu0 0
    %886 = vmatpush1.bf16.xpose.msra.mxu0 0
    %887 = vmatprep.subr.bf16.mxu0 0
    %888 = vmatpush1.bf16.xpose.msra.mxu0 0
    %889 = vmatprep.subr.bf16.mxu0 0
    %890 = vmatpush1.bf16.xpose.msra.mxu0 0
    %891 = vmatprep.subr.bf16.mxu0 0
    %892 = vmatpush1.bf16.xpose.msra.mxu0 0
    %893 = vmatprep.subr.bf16.mxu0 0
    %894 = vmatpush1.bf16.xpose.msra.mxu0 0
    %895 = vmatprep.subr.bf16.mxu0 0
    %896 = vmatpush1.bf16.xpose.msra.mxu0 0
    %897 = vmatprep.subr.bf16.mxu0 0
    %898 = vmatpush1.bf16.xpose.msra.mxu0 0
    %899 = vmatprep.subr.bf16.mxu0 0
    %900 = vmatpush1.bf16.xpose.msra.mxu0 0
    %901 = vmatprep.mubr.bf16.mxu0 0
    %902 = vmatmul.mubr.bf16.gmra.mrb[0].mxu0 %v864
    %v903 = vpop.f32.mrb[0].mxu0
    %v904 = vadd.f32 0.0, %v903
    %v905 = vpop.f32.mrb[0].mxu0
    %v906 = vpop.f32.mrb[0].mxu0
    %v907 = vpop.f32.mrb[0].mxu0
    %908 = vdwg.mxu0
    %v909 = vmul.f32 %v854, 0.35355338
    %v910 = vmul.f32 %v904, 0.35355338
    %v911 = vsel %vm144, %v909, -inf
    %912 = vmax.xlane.f32.xlu0 %v911
    %v913 = vpop.xlane.xlu0 %912
    %v914 = vsel %vm144, %v910, -inf
    %915 = vmax.xlane.f32.xlu0 %v914
    %v916 = vpop.xlane.xlu0 %915
    %v917 = vsub.f32 %v909, %v913
    %v918 = vsub.f32 %v910, %v916
    %v919 = vmul.f32 %v917, 1.442695
    %v920 = vpow.pop %v919
    %v921 = vmul.f32 %v918, 1.442695
    %v922 = vpow.pop %v921
    %v923 = vsel %vm144, %v920, 0.0
    %924 = vadd.xlane.f32.xlu0 %v923
    %v925 = vpop.xlane.xlu0 %924
    %v926 = vsel %vm144, %v922, 0.0
    %927 = vadd.xlane.f32.xlu0 %v926
    %v928 = vpop.xlane.xlu0 %927
    %v929 = vrcp.pop %v925
    %v930 = vrcp.pop %v928
    %v931 = vmul.f32 %v920, %v929
    %v932 = vmul.f32 %v922, %v930
    %v933 = vpack.c.bf16 %v931, %v931
    %v934 = vpack.c.bf16 %v932, %v932
    %935 = vrot.lane.b32.xlu0 %v266, 40
    %v936 = vpop.permute.xlu0 %935
    %v938 = vsel %vm144, %v933, 0
    %v941 = vsel %vm272, %v936, 0
    %943 = vmatprep.subr.bf16.mxu0 0
    %944 = vmatpush1.bf16.msra.mxu0 %v941
    %945 = vmatprep.subr.bf16.mxu0 0
    %946 = vmatpush1.bf16.msra.mxu0 0
    %947 = vmatprep.subr.bf16.mxu0 0
    %948 = vmatpush1.bf16.msra.mxu0 0
    %949 = vmatprep.subr.bf16.mxu0 0
    %950 = vmatpush1.bf16.msra.mxu0 0
    %951 = vmatprep.subr.bf16.mxu0 0
    %952 = vmatpush1.bf16.msra.mxu0 0
    %953 = vmatprep.subr.bf16.mxu0 0
    %954 = vmatpush1.bf16.msra.mxu0 0
    %955 = vmatprep.subr.bf16.mxu0 0
    %956 = vmatpush1.bf16.msra.mxu0 0
    %957 = vmatprep.subr.bf16.mxu0 0
    %958 = vmatpush1.bf16.msra.mxu0 0
    %959 = vmatprep.subr.bf16.mxu0 0
    %960 = vmatpush1.bf16.msra.mxu0 0
    %961 = vmatprep.subr.bf16.mxu0 0
    %962 = vmatpush1.bf16.msra.mxu0 0
    %963 = vmatprep.subr.bf16.mxu0 0
    %964 = vmatpush1.bf16.msra.mxu0 0
    %965 = vmatprep.subr.bf16.mxu0 0
    %966 = vmatpush1.bf16.msra.mxu0 0
    %967 = vmatprep.subr.bf16.mxu0 0
    %968 = vmatpush1.bf16.msra.mxu0 0
    %969 = vmatprep.subr.bf16.mxu0 0
    %970 = vmatpush1.bf16.msra.mxu0 0
    %971 = vmatprep.subr.bf16.mxu0 0
    %972 = vmatpush1.bf16.msra.mxu0 0
    %973 = vmatprep.subr.bf16.mxu0 0
    %974 = vmatpush1.bf16.msra.mxu0 0
    %975 = vmatprep.mubr.bf16.mxu0 0
    %976 = vmatmul.mubr.bf16.gmra.mrb[0].mxu0 %v938
    %v977 = vpop.f32.mrb[0].mxu0
    %v978 = vadd.f32 0.0, %v977
    %v979 = vpop.f32.mrb[0].mxu0
    %v980 = vpop.f32.mrb[0].mxu0
    %v981 = vpop.f32.mrb[0].mxu0
    %982 = vdwg.mxu0
    %983 = vrot.lane.b32.xlu0 %v316, 40
    %v984 = vpop.permute.xlu0 %983
    %v986 = vsel %vm144, %v934, 0
    %v989 = vsel %vm272, %v984, 0
    %991 = vmatprep.subr.bf16.mxu0 0
    %992 = vmatpush1.bf16.msra.mxu0 %v989
    %993 = vmatprep.subr.bf16.mxu0 0
    %994 = vmatpush1.bf16.msra.mxu0 0
    %995 = vmatprep.subr.bf16.mxu0 0
    %996 = vmatpush1.bf16.msra.mxu0 0
    %997 = vmatprep.subr.bf16.mxu0 0
    %998 = vmatpush1.bf16.msra.mxu0 0
    %999 = vmatprep.subr.bf16.mxu0 0
    %1000 = vmatpush1.bf16.msra.mxu0 0
    %1001 = vmatprep.subr.bf16.mxu0 0
    %1002 = vmatpush1.bf16.msra.mxu0 0
    %1003 = vmatprep.subr.bf16.mxu0 0
    %1004 = vmatpush1.bf16.msra.mxu0 0
    %1005 = vmatprep.subr.bf16.mxu0 0
    %1006 = vmatpush1.bf16.msra.mxu0 0
    %1007 = vmatprep.subr.bf16.mxu0 0
    %1008 = vmatpush1.bf16.msra.mxu0 0
    %1009 = vmatprep.subr.bf16.mxu0 0
    %1010 = vmatpush1.bf16.msra.mxu0 0
    %1011 = vmatprep.subr.bf16.mxu0 0
    %1012 = vmatpush1.bf16.msra.mxu0 0
    %1013 = vmatprep.subr.bf16.mxu0 0
    %1014 = vmatpush1.bf16.msra.mxu0 0
    %1015 = vmatprep.subr.bf16.mxu0 0
    %1016 = vmatpush1.bf16.msra.mxu0 0
    %1017 = vmatprep.subr.bf16.mxu0 0
    %1018 = vmatpush1.bf16.msra.mxu0 0
    %1019 = vmatprep.subr.bf16.mxu0 0
    %1020 = vmatpush1.bf16.msra.mxu0 0
    %1021 = vmatprep.subr.bf16.mxu0 0
    %1022 = vmatpush1.bf16.msra.mxu0 0
    %1023 = vmatprep.mubr.bf16.mxu0 0
    %1024 = vmatmul.mubr.bf16.gmra.mrb[0].mxu0 %v986
    %v1025 = vpop.f32.mrb[0].mxu0
    %v1026 = vadd.f32 0.0, %v1025
    %v1027 = vpop.f32.mrb[0].mxu0
    %v1028 = vpop.f32.mrb[0].mxu0
    %v1029 = vpop.f32.mrb[0].mxu0
    %1030 = vdwg.mxu0
    %1033 = vrot.lane.b32.xlu0 %v534, 8
    %v1034 = vpop.permute.xlu0 %1033
    %1035 = vrot.lane.b32.xlu0 %v582, 8
    %v1036 = vpop.permute.xlu0 %1035
    %1041 = vrot.lane.b32.xlu0 %v756, 16
    %v1042 = vpop.permute.xlu0 %1041
    %1043 = vrot.lane.b32.xlu0 %v804, 16
    %v1044 = vpop.permute.xlu0 %1043
    %1049 = vrot.lane.b32.xlu0 %v978, 24
    %v1050 = vpop.permute.xlu0 %1049
    %1051 = vrot.lane.b32.xlu0 %v1026, 24
    %v1052 = vpop.permute.xlu0 %1051
    %v1055 = vsel %vm144, %v311, %v1034
    %v1056 = vsel %vm144, %v360, %v1036
    %vm1057 = vcmask 130048
    %v1058 = vsel %vm1057, %v1055, %v1042
    %v1059 = vsel %vm1057, %v1056, %v1044
    %vm1060 = vcmask 195584
    %v1061 = vsel %vm1060, %v1058, %v1050
    %v1062 = vsel %vm1060, %v1059, %v1052
    %v1063 = vpack.c.bf16 %v1062, %v1061
    %v1064 = vlaneseq
    %v1065 = vshrl.u32 %v1064, 7
    %v1066 = vsub.s32 0, %v1065
    %v1067 = vrot.slane %v48, %v1066
    %1070 = vrot.lane.b32.xlu0 %v25, 32
    %v1071 = vpop.permute.xlu0 %1070
    %1072 = vrot.lane.b32.xlu0 %v26, 32
    %v1073 = vpop.permute.xlu0 %1072
    %v1077 = vsel %vm56, %v1063, 0
    %1079 = vmatprep.subr.bf16.mxu0 0
    %1080 = vmatpush1.bf16.msra.mxu0 %v1071
    %1081 = vmatprep.subr.bf16.mxu0 0
    %1082 = vmatpush1.bf16.msra.mxu0 %v1073
    %1083 = vmatprep.subr.bf16.mxu0 0
    %1084 = vmatpush1.bf16.msra.mxu0 0
    %1085 = vmatprep.subr.bf16.mxu0 0
    %1086 = vmatpush1.bf16.msra.mxu0 0
    %1087 = vmatprep.subr.bf16.mxu0 0
    %1088 = vmatpush1.bf16.msra.mxu0 0
    %1089 = vmatprep.subr.bf16.mxu0 0
    %1090 = vmatpush1.bf16.msra.mxu0 0
    %1091 = vmatprep.subr.bf16.mxu0 0
    %1092 = vmatpush1.bf16.msra.mxu0 0
    %1093 = vmatprep.subr.bf16.mxu0 0
    %1094 = vmatpush1.bf16.msra.mxu0 0
    %1095 = vmatprep.subr.bf16.mxu0 0
    %1096 = vmatpush1.bf16.msra.mxu0 0
    %1097 = vmatprep.subr.bf16.mxu0 0
    %1098 = vmatpush1.bf16.msra.mxu0 0
    %1099 = vmatprep.subr.bf16.mxu0 0
    %1100 = vmatpush1.bf16.msra.mxu0 0
    %1101 = vmatprep.subr.bf16.mxu0 0
    %1102 = vmatpush1.bf16.msra.mxu0 0
    %1103 = vmatprep.subr.bf16.mxu0 0
    %1104 = vmatpush1.bf16.msra.mxu0 0
    %1105 = vmatprep.subr.bf16.mxu0 0
    %1106 = vmatpush1.bf16.msra.mxu0 0
    %1107 = vmatprep.subr.bf16.mxu0 0
    %1108 = vmatpush1.bf16.msra.mxu0 0
    %1109 = vmatprep.subr.bf16.mxu0 0
    %1110 = vmatpush1.bf16.msra.mxu0 0
    %1111 = vmatprep.mubr.bf16.mxu0 0
    %1112 = vmatmul.mubr.bf16.gmra.mrb[0].mxu0 %v1077
    %v1113 = vpop.f32.mrb[0].mxu0
    %v1114 = vadd.f32 %v1067, %v1113
    %v1115 = vpop.f32.mrb[0].mxu0
    %v1116 = vpop.f32.mrb[0].mxu0
    %v1117 = vadd.f32 %v1067, %v1116
    %v1118 = vpop.f32.mrb[0].mxu0
    %1119 = vdwg.mxu0
    %v1120 = vadd.f32 %v19, %v1114
    %v1121 = vadd.f32 %v20, %v1117
    %v1122 = vsel %vm56, %v1120, 0.0
    %1123 = vadd.xlane.f32.xlu0 %v1122
    %v1124 = vpop.xlane.xlu0 %1123
    %v1125 = vsel %vm56, %v1121, 0.0
    %1126 = vadd.xlane.f32.xlu0 %v1125
    %v1127 = vpop.xlane.xlu0 %1126
    %v1128 = vrcp.pop 32.0
    %v1129 = vmul.f32 %v1124, %v1128
    %v1130 = vmul.f32 %v1127, %v1128
    %v1131 = vsub.f32 %v1120, %v1129
    %v1132 = vsub.f32 %v1121, %v1130
    %v1133 = vmul.f32 %v1131, %v1131
    %v1134 = vmul.f32 %v1132, %v1132
    %v1135 = vsel %vm56, %v1133, 0.0
    %1136 = vadd.xlane.f32.xlu0 %v1135
    %v1137 = vpop.xlane.xlu0 %1136
    %v1138 = vsel %vm56, %v1134, 0.0
    %1139 = vadd.xlane.f32.xlu0 %v1138
    %v1140 = vpop.xlane.xlu0 %1139
    %v1141 = vmul.f32 %v1137, %v1128
    %v1142 = vmul.f32 %v1140, %v1128
    %v1143 = vadd.f32 %v1141, 1e-05
    %v1144 = vadd.f32 %v1142, 1e-05
    %v1145 = vrsqrt.pop %v1143
    %v1146 = vrsqrt.pop %v1144
    %v1147 = vmul.f32 %v1131, %v1145
    %v1148 = vmul.f32 %v1132, %v1146
    %v1149 = vlaneseq
    %v1150 = vshrl.u32 %v1149, 7
    %v1151 = vsub.s32 0, %v1150
    %v1152 = vrot.slane %v49, %v1151
    %v1153 = vmul.f32 %v1147, %v1152
    %v1154 = vmul.f32 %v1148, %v1152
    %v1155 = vlaneseq
    %v1156 = vshrl.u32 %v1155, 7
    %v1157 = vsub.s32 0, %v1156
    %v1158 = vrot.slane %v50, %v1157
    %v1159 = vadd.f32 %v1153, %v1158
    %v1160 = vadd.f32 %v1154, %v1158
    %v1161 = vpack.c.bf16 %v1160, %v1159
    %v1162 = vlaneseq
    %v1163 = vshrl.u32 %v1162, 7
    %v1164 = vsub.s32 0, %v1163
    %v1165 = vrot.slane %v51, %v1164
    %v1167 = vsel %vm56, %v1161, 0
    %1169 = vmatprep.subr.bf16.mxu0 0
    %1170 = vmatpush1.bf16.msra.mxu0 %v31
    %1171 = vmatprep.subr.bf16.mxu0 0
    %1172 = vmatpush1.bf16.msra.mxu0 %v32
    %1173 = vmatprep.subr.bf16.mxu0 0
    %1174 = vmatpush1.bf16.msra.mxu0 0
    %1175 = vmatprep.subr.bf16.mxu0 0
    %1176 = vmatpush1.bf16.msra.mxu0 0
    %1177 = vmatprep.subr.bf16.mxu0 0
    %1178 = vmatpush1.bf16.msra.mxu0 0
    %1179 = vmatprep.subr.bf16.mxu0 0
    %1180 = vmatpush1.bf16.msra.mxu0 0
    %1181 = vmatprep.subr.bf16.mxu0 0
    %1182 = vmatpush1.bf16.msra.mxu0 0
    %1183 = vmatprep.subr.bf16.mxu0 0
    %1184 = vmatpush1.bf16.msra.mxu0 0
    %1185 = vmatprep.subr.bf16.mxu0 0
    %1186 = vmatpush1.bf16.msra.mxu0 0
    %1187 = vmatprep.subr.bf16.mxu0 0
    %1188 = vmatpush1.bf16.msra.mxu0 0
    %1189 = vmatprep.subr.bf16.mxu0 0
    %1190 = vmatpush1.bf16.msra.mxu0 0
    %1191 = vmatprep.subr.bf16.mxu0 0
    %1192 = vmatpush1.bf16.msra.mxu0 0
    %1193 = vmatprep.subr.bf16.mxu0 0
    %1194 = vmatpush1.bf16.msra.mxu0 0
    %1195 = vmatprep.subr.bf16.mxu0 0
    %1196 = vmatpush1.bf16.msra.mxu0 0
    %1197 = vmatprep.subr.bf16.mxu0 0
    %1198 = vmatpush1.bf16.msra.mxu0 0
    %1199 = vmatprep.subr.bf16.mxu0 0
    %1200 = vmatpush1.bf16.msra.mxu0 0
    %1201 = vmatprep.mubr.bf16.mxu0 0
    %1202 = vmatmul.mubr.bf16.gmra.mrb[0].mxu0 %v1167
    %v1203 = vpop.f32.mrb[0].mxu0
    %v1204 = vadd.f32 %v1165, %v1203
    %v1205 = vpop.f32.mrb[0].mxu0
    %v1206 = vpop.f32.mrb[0].mxu0
    %v1207 = vadd.f32 %v1165, %v1206
    %v1208 = vpop.f32.mrb[0].mxu0
    %1209 = vdwg.mxu0
    %v1210 = vmax.f32 %v1204, 0.0
    %v1211 = vmax.f32 %v1207, 0.0
    %v1212 = vpack.c.bf16 %v1211, %v1210
    %v1213 = vlaneseq
    %v1214 = vshrl.u32 %v1213, 7
    %v1215 = vsub.s32 0, %v1214
    %v1216 = vrot.slane %v52, %v1215
    %vm1217 = vcmask 523264
    %v1219 = vsel %vm1217, %v1212, 0
    %1221 = vmatprep.subr.bf16.mxu0 0
    %1222 = vmatpush1.bf16.msra.mxu0 %v41
    %1223 = vmatprep.subr.bf16.mxu0 0
    %1224 = vmatpush1.bf16.msra.mxu0 %v42
    %1225 = vmatprep.subr.bf16.mxu0 0
    %1226 = vmatpush1.bf16.msra.mxu0 %v43
    %1227 = vmatprep.subr.bf16.mxu0 0
    %1228 = vmatpush1.bf16.msra.mxu0 %v44
    %1229 = vmatprep.subr.bf16.mxu0 0
    %1230 = vmatpush1.bf16.msra.mxu0 0
    %1231 = vmatprep.subr.bf16.mxu0 0
    %1232 = vmatpush1.bf16.msra.mxu0 0
    %1233 = vmatprep.subr.bf16.mxu0 0
    %1234 = vmatpush1.bf16.msra.mxu0 0
    %1235 = vmatprep.subr.bf16.mxu0 0
    %1236 = vmatpush1.bf16.msra.mxu0 0
    %1237 = vmatprep.subr.bf16.mxu0 0
    %1238 = vmatpush1.bf16.msra.mxu0 0
    %1239 = vmatprep.subr.bf16.mxu0 0
    %1240 = vmatpush1.bf16.msra.mxu0 0
    %1241 = vmatprep.subr.bf16.mxu0 0
    %1242 = vmatpush1.bf16.msra.mxu0 0
    %1243 = vmatprep.subr.bf16.mxu0 0
    %1244 = vmatpush1.bf16.msra.mxu0 0
    %1245 = vmatprep.subr.bf16.mxu0 0
    %1246 = vmatpush1.bf16.msra.mxu0 0
    %1247 = vmatprep.subr.bf16.mxu0 0
    %1248 = vmatpush1.bf16.msra.mxu0 0
    %1249 = vmatprep.subr.bf16.mxu0 0
    %1250 = vmatpush1.bf16.msra.mxu0 0
    %1251 = vmatprep.subr.bf16.mxu0 0
    %1252 = vmatpush1.bf16.msra.mxu0 0
    %1253 = vmatprep.mubr.bf16.mxu0 0
    %1254 = vmatmul.mubr.bf16.gmra.mrb[0].mxu0 %v1219
    %v1255 = vpop.f32.mrb[0].mxu0
    %v1256 = vadd.f32 %v1216, %v1255
    %v1257 = vpop.f32.mrb[0].mxu0
    %v1258 = vpop.f32.mrb[0].mxu0
    %v1259 = vadd.f32 %v1216, %v1258
    %v1260 = vpop.f32.mrb[0].mxu0
    %1261 = vdwg.mxu0
    %v1262 = vadd.f32 %v1159, %v1256
    %v1263 = vadd.f32 %v1160, %v1259
    %v1264 = vsel %vm56, %v1262, 0.0
    %1265 = vadd.xlane.f32.xlu0 %v1264
    %v1266 = vpop.xlane.xlu0 %1265
    %v1267 = vsel %vm56, %v1263, 0.0
    %1268 = vadd.xlane.f32.xlu0 %v1267
    %v1269 = vpop.xlane.xlu0 %1268
    %v1270 = vmul.f32 %v1266, %v1128
    %v1271 = vmul.f32 %v1269, %v1128
    %v1272 = vsub.f32 %v1262, %v1270
    %v1273 = vsub.f32 %v1263, %v1271
    %v1274 = vmul.f32 %v1272, %v1272
    %v1275 = vmul.f32 %v1273, %v1273
    %v1276 = vsel %vm56, %v1274, 0.0
    %1277 = vadd.xlane.f32.xlu0 %v1276
    %v1278 = vpop.xlane.xlu0 %1277
    %v1279 = vsel %vm56, %v1275, 0.0
    %1280 = vadd.xlane.f32.xlu0 %v1279
    %v1281 = vpop.xlane.xlu0 %1280
    %v1282 = vmul.f32 %v1278, %v1128
    %v1283 = vmul.f32 %v1281, %v1128
    %v1284 = vadd.f32 %v1282, 1e-05
    %v1285 = vadd.f32 %v1283, 1e-05
    %v1286 = vrsqrt.pop %v1284
    %v1287 = vrsqrt.pop %v1285
    %v1288 = vmul.f32 %v1272, %v1286
    %v1289 = vmul.f32 %v1273, %v1287
    %v1290 = vlaneseq
    %v1291 = vshrl.u32 %v1290, 7
    %v1292 = vsub.s32 0, %v1291
    %v1293 = vrot.slane %v53, %v1292
    %v1294 = vmul.f32 %v1288, %v1293
    %v1295 = vmul.f32 %v1289, %v1293
    %v1296 = vlaneseq
    %v1297 = vshrl.u32 %v1296, 7
    %v1298 = vsub.s32 0, %v1297
    %v1299 = vrot.slane %v54, %v1298
    %v1300 = vadd.f32 %v1294, %v1299
    %v1301 = vadd.f32 %v1295, %v1299
    %1302 = vst.msk [vmem:[#allocation2] sm:$0xff] %vm56, %v1300
    %1303 = vst.msk [vmem:[#allocation2 + $0x8] sm:$0xff] %vm56, %v1301
    // Predicated region
    $region18: #{encoder_unit.1} parent=1 // pred_check
      _
    $region19: #{encoder_unit.1} parent=1 // pred_check_branch
      %1305 = sbr.rel (0) target = $region21
    $region20: #{encoder_unit.1} parent=1 // pred_region
      %s1307 = ssub.s32 256, 256
      %1308 = vsyncadd [#allocation3], %s1307
      %s1309 = sshll.u32 [#allocation2], 4
      %s1310 = int_to_ptr.vmem [resolvable:$true] %s1309
      %1315 = dma.vmem_to_hbm [thread:$0]  %s1310, 256, %s4, [#allocation3], 128, 128, 8
    $region21: #{encoder_unit.1} parent=1 // pred_fallthru
      _
    // Predicated region
    $region22: #{encoder_unit.1} parent=1 // pred_check
      _
    $region23: #{encoder_unit.1} parent=1 // pred_check_branch
      %1317 = sbr.rel (0) target = $region25
    $region24: #{encoder_unit.1} parent=1 // pred_region
      %1318 = dma.done [#allocation3], 256
    $region25: #{encoder_unit.1} parent=1 // pred_fallthru
      _
    %1319 = vsyncpa [#allocation3], 1

</llo_original>
